<compile_context>
chip_gen: v7x
topology: tpu7x:2x2x1
jax: 0.10.0
libtpu: 0.0.40
codegen_flags: <defaults>
</compile_context>

<pallas_src>
import functools

import jax
import jax.numpy as jnp
from jax.experimental import pallas as pl
from jax.experimental.pallas import tpu as pltpu


def _round_up(x, m):
    return (x + m - 1) // m * m


def _dp_kernel(*refs, n_real, has_mask):
    """One batch element. Channels on sublanes, time on lanes."""
    if has_mask:
        x_ref, m_ref, w1_ref, w2_ref, vec_ref, bout_ref, o_ref = refs
    else:
        x_ref, w1_ref, w2_ref, vec_ref, bout_ref, o_ref = refs

    f32 = jnp.float32
    bf16 = jnp.bfloat16
    inv_n = 1.0 / float(n_real)
    eps = 1e-12

    x = x_ref[0]                                   # (idim, T), native dtype
    if has_mask:
        keep = m_ref[0] == 0                       # (1, T); True == real frame
        x = jnp.where(keep, x, 0)                  # xs.masked_fill(x_masks, 0.0)

    vec = vec_ref[...].astype(f32)                 # (C, 5) packed column vectors
    b1, g1, be1, b2, wg2 = (vec[:, i:i + 1] for i in range(5))

    def conv3(w_ref, h, b):
        # Conv1d(k=3, pad=1): three per-tap MXU matmuls against shifted views of the
        # same rhs; bf16 operands, f32 accumulation. No (3*C_in, T) taps materialized.
        z = jnp.zeros((h.shape[0], 1), h.dtype)
        h_prev = jnp.concatenate([z, h[:, :-1]], axis=1)     # h[t-1]
        h_next = jnp.concatenate([h[:, 1:], z], axis=1)      # h[t+1]
        y = jnp.dot(w_ref[0], h_prev.astype(bf16), preferred_element_type=f32)
        y = y + jnp.dot(w_ref[1], h.astype(bf16), preferred_element_type=f32)
        y = y + jnp.dot(w_ref[2], h_next.astype(bf16), preferred_element_type=f32)
        return y + b

    def relu_norm(y):
        # ReLU + channel LayerNorm (eps=1e-12), single-pass stats. Padded channels are
        # exactly zero, so the sums only see real channels; divide by n_real.
        y = jnp.maximum(y, 0.0)
        mean = jnp.sum(y, axis=0, keepdims=True) * inv_n
        var = jnp.sum(y * y, axis=0, keepdims=True) * inv_n - mean * mean
        var = jnp.maximum(var, 0.0)
        return (y - mean) * jax.lax.rsqrt(var + eps)

    # Layer 1 (its LN affine feeds conv 2, so apply it explicitly; padded rows -> 0
    # because the padded g1/be1 entries are zero).
    h = relu_norm(conv3(w1_ref, x, b1))
    h = h * g1 + be1

    # Layer 2: LN affine folded into the final Linear(n_chans, 1):
    #   out = sum_c norm(y2) * (g2*wl)  +  (sum_c be2*wl + bl)
    h = relu_norm(conv3(w2_ref, h, b2))
    out = jnp.sum(h * wg2, axis=0, keepdims=True) + bout_ref[0, 0]   # (1, T)
    if has_mask:
        out = jnp.where(keep, out, 0.0)            # output masked_fill
    o_ref[...] = out[None].astype(o_ref.dtype)     # lane-dense (1, 1, T) store


def _pack_params(params, idim, n_chans, c_pad):
    """Re-layout PyTorch-style params for the transposed, per-tap bf16 kernel."""
    f32, bf16 = jnp.float32, jnp.bfloat16
    pc = c_pad - n_chans

    # Conv weights stored as (K=3, Cin, Cout) -> per tap (Cout_pad, Cin[_pad]) in bf16.
    w1 = jnp.transpose(params["w1"].astype(f32), (0, 2, 1))            # (3, C, idim)
    w1 = jnp.pad(w1, ((0, 0), (0, pc), (0, 0))).astype(bf16)           # (3, Cp, idim)
    w2 = jnp.transpose(params["w2"].astype(f32), (0, 2, 1))            # (3, C, C)
    w2 = jnp.pad(w2, ((0, 0), (0, pc), (0, pc))).astype(bf16)          # (3, Cp, Cp)

    pad = lambda v: jnp.pad(v.astype(f32), (0, pc))
    wl = params["wl"].astype(f32)[:, 0]
    vecs = jnp.stack(
        [pad(params["b1"]), pad(params["g1"]), pad(params["be1"]),
         pad(params["b2"]), pad(params["g2"].astype(f32) * wl)], axis=1)   # (Cp, 5)
    bout = (jnp.sum(params["be2"].astype(f32) * wl)
            + params["bl"].astype(f32)[0]).reshape(1, 1)
    return dict(w1=w1, w2=w2, vecs=vecs, bout=bout)


def duration_predictor_forward(xs, params, x_masks=None):
    """xs: (B, T, idim) float. x_masks: optional (B, T)/(B, T, 1), True == padded.
    Returns (B, T) float32 (training forward path)."""
    B, T, idim = xs.shape
    n_chans = params["g1"].shape[0]
    c_pad = _round_up(n_chans, 128)
    kp = _pack_params(params, idim, n_chans, c_pad)

    # Time on lanes: (B, idim, T). xs stays in its native dtype (cast in-kernel).
    xs_t = jnp.transpose(xs, (0, 2, 1))

    has_mask = x_masks is not None
    args = [xs_t]
    in_specs = [pl.BlockSpec((1, idim, T), lambda b: (b, 0, 0))]
    if has_mask:
        args.append(x_masks.reshape(B, 1, T).astype(jnp.int8))
        in_specs.append(pl.BlockSpec((1, 1, T), lambda b: (b, 0, 0)))
    args += [kp["w1"], kp["w2"], kp["vecs"], kp["bout"]]
    in_specs += [
        pl.BlockSpec((3, c_pad, idim), lambda b: (0, 0, 0)),     # per-tap conv1 weights
        pl.BlockSpec((3, c_pad, c_pad), lambda b: (0, 0, 0)),    # per-tap conv2 weights
        pl.BlockSpec((c_pad, 5), lambda b: (0, 0)),              # b1|g1|be1|b2|g2*wl
        pl.BlockSpec(memory_space=pltpu.MemorySpace.SMEM),       # folded output bias
    ]
    # Weight index_maps are constant so they are only fetched once; single-buffering
    # them and a halo'd T-tiling grid axis are the next VMEM-headroom steps for very
    # long sequences / B == 1 on v7x.

    out = pl.pallas_call(
        functools.partial(_dp_kernel, n_real=n_chans, has_mask=has_mask),
        out_shape=jax.ShapeDtypeStruct((B, 1, T), jnp.float32),
        grid=(B,),
        in_specs=in_specs,
        out_specs=pl.BlockSpec((1, 1, T), lambda b: (b, 0, 0)),
        compiler_params=pltpu.CompilerParams(
            dimension_semantics=("parallel",),
            vmem_limit_bytes=48 * 1024 * 1024,   # v5e default scoped limit is ~16 MiB
        ),
    )(*args)
    return out[:, 0, :]                                          # (B, T)


def init_params(key, idim, n_chans, kernel_size=3):
    """Deterministic synthetic parameters (shapes match the PyTorch module)."""
    ks = jax.random.split(key, 10)
    s = 0.05
    # Conv1d weights stored as (K, Cin, Cout); PyTorch stores (Cout, Cin, K).
    w1 = s * jax.random.normal(ks[0], (kernel_size, idim, n_chans), jnp.float32)
    b1 = s * jax.random.normal(ks[1], (n_chans,), jnp.float32)
    w2 = s * jax.random.normal(ks[2], (kernel_size, n_chans, n_chans), jnp.float32)
    b2 = s * jax.random.normal(ks[3], (n_chans,), jnp.float32)
    g1 = 1.0 + 0.1 * jax.random.normal(ks[4], (n_chans,), jnp.float32)
    be1 = 0.1 * jax.random.normal(ks[5], (n_chans,), jnp.float32)
    g2 = 1.0 + 0.1 * jax.random.normal(ks[6], (n_chans,), jnp.float32)
    be2 = 0.1 * jax.random.normal(ks[7], (n_chans,), jnp.float32)
    wl = s * jax.random.normal(ks[8], (n_chans, 1), jnp.float32)
    bl = s * jax.random.normal(ks[9], (1,), jnp.float32)
    return dict(w1=w1, b1=b1, g1=g1, be1=be1,
                w2=w2, b2=b2, g2=g2, be2=be2,
                wl=wl, bl=bl)


def ref_forward(xs, p, x_masks=None):
    """Pure-JAX f32 reference (unfused, two-pass LayerNorm) mirroring the PyTorch module."""
    if x_masks is not None:
        xs = jnp.where(x_masks[..., None], 0.0, xs)
    h = xs
    for (w, b, g, be) in ((p["w1"], p["b1"], p["g1"], p["be1"]),
                          (p["w2"], p["b2"], p["g2"], p["be2"])):
        hp = jnp.pad(h, ((0, 0), (1, 1), (0, 0)))
        y = (jnp.einsum("btc,cd->btd", hp[:, :-2], w[0])
             + jnp.einsum("btc,cd->btd", hp[:, 1:-1], w[1])
             + jnp.einsum("btc,cd->btd", hp[:, 2:], w[2]) + b)
        y = jnp.maximum(y, 0.0)
        mu = y.mean(-1, keepdims=True)
        var = ((y - mu) ** 2).mean(-1, keepdims=True)
        h = (y - mu) / jnp.sqrt(var + 1e-12) * g + be
    out = (jnp.einsum("btc,co->bto", h, p["wl"]) + p["bl"])[..., 0]
    if x_masks is not None:
        out = jnp.where(x_masks, 0.0, out)
    return out


if __name__ == "__main__":
    # Small shapes consistent with the module's forward: xs = (B, T, idim).
    B, T, idim, n_chans = 2, 16, 32, 64

    key = jax.random.PRNGKey(0)
    k_x, k_p, k_m = jax.random.split(key, 3)
    xs = jax.random.normal(k_x, (B, T, idim), jnp.float32)
    params = init_params(k_p, idim, n_chans)

    fwd = jax.jit(lambda x, m=None: duration_predictor_forward(x, params, m))

    out = fwd(xs)
    jax.block_until_ready(out)

    mask = jax.random.bernoulli(k_m, 0.3, (B, T))
    out_masked = fwd(xs, mask)
    jax.block_until_ready(out_masked)

    ref = ref_forward(xs, params)
    ref_masked = ref_forward(xs, params, mask)

    assert out.shape == (B, T), out.shape
    # bf16 MXU operands (f32 accumulation) => looser tolerance than a pure-f32 kernel.
    err = float(jnp.max(jnp.abs(out - ref)))
    err_m = float(jnp.max(jnp.abs(out_masked - ref_masked)))
    assert err < 6e-2, err
    assert err_m < 6e-2, err_m
    print("KERNEL_OK")
</pallas_src>

<mosaic_0001>
module attributes {stable_mosaic.version = 11 : i64} {
  func.func @_dp_kernel(%arg0: i32, %arg1: memref<1x32x16xf32, #tpu.memory_space<vmem>>, %arg2: memref<3x128x32xbf16, #tpu.memory_space<vmem>>, %arg3: memref<3x128x128xbf16, #tpu.memory_space<vmem>>, %arg4: memref<128x5xf32, #tpu.memory_space<vmem>>, %arg5: memref<1x1xf32, #tpu.memory_space<smem>>, %arg6: memref<1x1x16xf32, #tpu.memory_space<vmem>>) attributes {dimension_semantics = [#tpu.dimension_semantics<parallel>], iteration_bounds = array<i64: 2>, scalar_prefetch = 0 : i64, scratch_operands = 0 : i64, tpu.core_type = #tpu.core_type<tc>, window_params = [{transform_indices = @transform_0, window_bounds = array<i64: 1, 32, 16>}, {pipeline_mode = #tpu.pipeline_mode<synchronous>, transform_indices = @transform_1, window_bounds = array<i64: 3, 128, 32>}, {pipeline_mode = #tpu.pipeline_mode<synchronous>, transform_indices = @transform_2, window_bounds = array<i64: 3, 128, 128>}, {pipeline_mode = #tpu.pipeline_mode<synchronous>, transform_indices = @transform_3, window_bounds = array<i64: 128, 5>}, {transform_indices = @transform_4, window_bounds = array<i64: 1, 1>}, {transform_indices = @transform_5, window_bounds = array<i64: 1, 1, 16>}]} {
    %c0 = arith.constant 0 : index
    %c0_0 = arith.constant 0 : index
    %c0_1 = arith.constant 0 : index
    %0 = vector.load %arg1[%c0, %c0_0, %c0_1] : memref<1x32x16xf32, #tpu.memory_space<vmem>>, vector<1x32x16xf32>
    %1 = vector.shape_cast %0 : vector<1x32x16xf32> to vector<32x16xf32>
    %c0_2 = arith.constant 0 : index
    %c0_3 = arith.constant 0 : index
    %2 = vector.load %arg4[%c0_2, %c0_3] : memref<128x5xf32, #tpu.memory_space<vmem>>, vector<128x5xf32>
    %3 = vector.extract_strided_slice %2 {offsets = [0, 0], sizes = [128, 1], strides = [1, 1]} : vector<128x5xf32> to vector<128x1xf32>
    %4 = vector.extract_strided_slice %2 {offsets = [0, 1], sizes = [128, 1], strides = [1, 1]} : vector<128x5xf32> to vector<128x1xf32>
    %5 = vector.extract_strided_slice %2 {offsets = [0, 2], sizes = [128, 1], strides = [1, 1]} : vector<128x5xf32> to vector<128x1xf32>
    %6 = vector.extract_strided_slice %2 {offsets = [0, 3], sizes = [128, 1], strides = [1, 1]} : vector<128x5xf32> to vector<128x1xf32>
    %7 = vector.extract_strided_slice %2 {offsets = [0, 4], sizes = [128, 1], strides = [1, 1]} : vector<128x5xf32> to vector<128x1xf32>
    %cst = arith.constant 0.000000e+00 : f32
    %8 = vector.broadcast %cst : f32 to vector<32x1xf32>
    %9 = vector.extract_strided_slice %1 {offsets = [0, 0], sizes = [32, 15], strides = [1, 1]} : vector<32x16xf32> to vector<32x15xf32>
    %10 = tpu.concatenate %8, %9 in 1 : vector<32x1xf32>, vector<32x15xf32> -> vector<32x16xf32>
    %11 = vector.extract_strided_slice %1 {offsets = [0, 1], sizes = [32, 15], strides = [1, 1]} : vector<32x16xf32> to vector<32x15xf32>
    %12 = tpu.concatenate %11, %8 in 1 : vector<32x15xf32>, vector<32x1xf32> -> vector<32x16xf32>
    %c0_4 = arith.constant 0 : index
    %c0_5 = arith.constant 0 : index
    %c0_6 = arith.constant 0 : index
    %13 = vector.load %arg2[%c0_4, %c0_5, %c0_6] : memref<3x128x32xbf16, #tpu.memory_space<vmem>>, vector<1x128x32xbf16>
    %14 = vector.shape_cast %13 : vector<1x128x32xbf16> to vector<128x32xbf16>
    %15 = arith.truncf %10 : vector<32x16xf32> to vector<32x16xbf16>
    %cst_7 = arith.constant dense<0.000000e+00> : vector<128x16xf32>
    %16 = tpu.matmul %14, %15, %cst_7 {dimension_numbers = #tpu.dot_dimension_numbers<[1], [0], [0], [1], [0, 0, 1, 1], [], []>} : vector<128x32xbf16>, vector<32x16xbf16>, vector<128x16xf32> -> vector<128x16xf32>
    %c1 = arith.constant 1 : index
    %c0_8 = arith.constant 0 : index
    %c0_9 = arith.constant 0 : index
    %17 = vector.load %arg2[%c1, %c0_8, %c0_9] : memref<3x128x32xbf16, #tpu.memory_space<vmem>>, vector<1x128x32xbf16>
    %18 = vector.shape_cast %17 : vector<1x128x32xbf16> to vector<128x32xbf16>
    %19 = arith.truncf %1 : vector<32x16xf32> to vector<32x16xbf16>
    %cst_10 = arith.constant dense<0.000000e+00> : vector<128x16xf32>
    %20 = tpu.matmul %18, %19, %cst_10 {dimension_numbers = #tpu.dot_dimension_numbers<[1], [0], [0], [1], [0, 0, 1, 1], [], []>} : vector<128x32xbf16>, vector<32x16xbf16>, vector<128x16xf32> -> vector<128x16xf32>
    %21 = arith.addf %16, %20 : vector<128x16xf32>
    %c2 = arith.constant 2 : index
    %c0_11 = arith.constant 0 : index
    %c0_12 = arith.constant 0 : index
    %22 = vector.load %arg2[%c2, %c0_11, %c0_12] : memref<3x128x32xbf16, #tpu.memory_space<vmem>>, vector<1x128x32xbf16>
    %23 = vector.shape_cast %22 : vector<1x128x32xbf16> to vector<128x32xbf16>
    %24 = arith.truncf %12 : vector<32x16xf32> to vector<32x16xbf16>
    %cst_13 = arith.constant dense<0.000000e+00> : vector<128x16xf32>
    %25 = tpu.matmul %23, %24, %cst_13 {dimension_numbers = #tpu.dot_dimension_numbers<[1], [0], [0], [1], [0, 0, 1, 1], [], []>} : vector<128x32xbf16>, vector<32x16xbf16>, vector<128x16xf32> -> vector<128x16xf32>
    %26 = arith.addf %21, %25 : vector<128x16xf32>
    %27 = vector.broadcast %3 : vector<128x1xf32> to vector<128x16xf32>
    %28 = arith.addf %26, %27 : vector<128x16xf32>
    %cst_14 = arith.constant 0.000000e+00 : f32
    %29 = vector.broadcast %cst_14 : f32 to vector<128x16xf32>
    %30 = arith.maximumf %28, %29 : vector<128x16xf32>
    %cst_15 = arith.constant dense<0.000000e+00> : vector<16xf32>
    %31 = vector.multi_reduction <add>, %30, %cst_15 [0] : vector<128x16xf32> to vector<16xf32>
    %32 = vector.shape_cast %31 : vector<16xf32> to vector<1x16xf32>
    %cst_16 = arith.constant 1.562500e-02 : f32
    %33 = vector.broadcast %cst_16 : f32 to vector<1x16xf32>
    %34 = arith.mulf %32, %33 : vector<1x16xf32>
    %35 = arith.mulf %30, %30 : vector<128x16xf32>
    %cst_17 = arith.constant dense<0.000000e+00> : vector<16xf32>
    %36 = vector.multi_reduction <add>, %35, %cst_17 [0] : vector<128x16xf32> to vector<16xf32>
    %37 = vector.shape_cast %36 : vector<16xf32> to vector<1x16xf32>
    %cst_18 = arith.constant 1.562500e-02 : f32
    %38 = vector.broadcast %cst_18 : f32 to vector<1x16xf32>
    %39 = arith.mulf %37, %38 : vector<1x16xf32>
    %40 = arith.mulf %34, %34 : vector<1x16xf32>
    %41 = arith.subf %39, %40 : vector<1x16xf32>
    %cst_19 = arith.constant 0.000000e+00 : f32
    %42 = vector.broadcast %cst_19 : f32 to vector<1x16xf32>
    %43 = arith.maximumf %41, %42 : vector<1x16xf32>
    %44 = vector.broadcast %34 : vector<1x16xf32> to vector<128x16xf32>
    %45 = arith.subf %30, %44 : vector<128x16xf32>
    %cst_20 = arith.constant 9.99999996E-13 : f32
    %46 = vector.broadcast %cst_20 : f32 to vector<1x16xf32>
    %47 = arith.addf %43, %46 : vector<1x16xf32>
    %48 = math.rsqrt %47 : vector<1x16xf32>
    %49 = vector.broadcast %48 : vector<1x16xf32> to vector<128x16xf32>
    %50 = arith.mulf %45, %49 : vector<128x16xf32>
    %51 = vector.broadcast %4 : vector<128x1xf32> to vector<128x16xf32>
    %52 = arith.mulf %50, %51 : vector<128x16xf32>
    %53 = vector.broadcast %5 : vector<128x1xf32> to vector<128x16xf32>
    %54 = arith.addf %52, %53 : vector<128x16xf32>
    %cst_21 = arith.constant 0.000000e+00 : f32
    %55 = vector.broadcast %cst_21 : f32 to vector<128x1xf32>
    %56 = vector.extract_strided_slice %54 {offsets = [0, 0], sizes = [128, 15], strides = [1, 1]} : vector<128x16xf32> to vector<128x15xf32>
    %57 = tpu.concatenate %55, %56 in 1 : vector<128x1xf32>, vector<128x15xf32> -> vector<128x16xf32>
    %58 = vector.extract_strided_slice %54 {offsets = [0, 1], sizes = [128, 15], strides = [1, 1]} : vector<128x16xf32> to vector<128x15xf32>
    %59 = tpu.concatenate %58, %55 in 1 : vector<128x15xf32>, vector<128x1xf32> -> vector<128x16xf32>
    %c0_22 = arith.constant 0 : index
    %c0_23 = arith.constant 0 : index
    %c0_24 = arith.constant 0 : index
    %60 = vector.load %arg3[%c0_22, %c0_23, %c0_24] : memref<3x128x128xbf16, #tpu.memory_space<vmem>>, vector<1x128x128xbf16>
    %61 = vector.shape_cast %60 : vector<1x128x128xbf16> to vector<128x128xbf16>
    %62 = arith.truncf %57 : vector<128x16xf32> to vector<128x16xbf16>
    %cst_25 = arith.constant dense<0.000000e+00> : vector<128x16xf32>
    %63 = tpu.matmul %61, %62, %cst_25 {dimension_numbers = #tpu.dot_dimension_numbers<[1], [0], [0], [1], [0, 0, 1, 1], [], []>} : vector<128x128xbf16>, vector<128x16xbf16>, vector<128x16xf32> -> vector<128x16xf32>
    %c1_26 = arith.constant 1 : index
    %c0_27 = arith.constant 0 : index
    %c0_28 = arith.constant 0 : index
    %64 = vector.load %arg3[%c1_26, %c0_27, %c0_28] : memref<3x128x128xbf16, #tpu.memory_space<vmem>>, vector<1x128x128xbf16>
    %65 = vector.shape_cast %64 : vector<1x128x128xbf16> to vector<128x128xbf16>
    %66 = arith.truncf %54 : vector<128x16xf32> to vector<128x16xbf16>
    %cst_29 = arith.constant dense<0.000000e+00> : vector<128x16xf32>
    %67 = tpu.matmul %65, %66, %cst_29 {dimension_numbers = #tpu.dot_dimension_numbers<[1], [0], [0], [1], [0, 0, 1, 1], [], []>} : vector<128x128xbf16>, vector<128x16xbf16>, vector<128x16xf32> -> vector<128x16xf32>
    %68 = arith.addf %63, %67 : vector<128x16xf32>
    %c2_30 = arith.constant 2 : index
    %c0_31 = arith.constant 0 : index
    %c0_32 = arith.constant 0 : index
    %69 = vector.load %arg3[%c2_30, %c0_31, %c0_32] : memref<3x128x128xbf16, #tpu.memory_space<vmem>>, vector<1x128x128xbf16>
    %70 = vector.shape_cast %69 : vector<1x128x128xbf16> to vector<128x128xbf16>
    %71 = arith.truncf %59 : vector<128x16xf32> to vector<128x16xbf16>
    %cst_33 = arith.constant dense<0.000000e+00> : vector<128x16xf32>
    %72 = tpu.matmul %70, %71, %cst_33 {dimension_numbers = #tpu.dot_dimension_numbers<[1], [0], [0], [1], [0, 0, 1, 1], [], []>} : vector<128x128xbf16>, vector<128x16xbf16>, vector<128x16xf32> -> vector<128x16xf32>
    %73 = arith.addf %68, %72 : vector<128x16xf32>
    %74 = vector.broadcast %6 : vector<128x1xf32> to vector<128x16xf32>
    %75 = arith.addf %73, %74 : vector<128x16xf32>
    %cst_34 = arith.constant 0.000000e+00 : f32
    %76 = vector.broadcast %cst_34 : f32 to vector<128x16xf32>
    %77 = arith.maximumf %75, %76 : vector<128x16xf32>
    %cst_35 = arith.constant dense<0.000000e+00> : vector<16xf32>
    %78 = vector.multi_reduction <add>, %77, %cst_35 [0] : vector<128x16xf32> to vector<16xf32>
    %79 = vector.shape_cast %78 : vector<16xf32> to vector<1x16xf32>
    %cst_36 = arith.constant 1.562500e-02 : f32
    %80 = vector.broadcast %cst_36 : f32 to vector<1x16xf32>
    %81 = arith.mulf %79, %80 : vector<1x16xf32>
    %82 = arith.mulf %77, %77 : vector<128x16xf32>
    %cst_37 = arith.constant dense<0.000000e+00> : vector<16xf32>
    %83 = vector.multi_reduction <add>, %82, %cst_37 [0] : vector<128x16xf32> to vector<16xf32>
    %84 = vector.shape_cast %83 : vector<16xf32> to vector<1x16xf32>
    %cst_38 = arith.constant 1.562500e-02 : f32
    %85 = vector.broadcast %cst_38 : f32 to vector<1x16xf32>
    %86 = arith.mulf %84, %85 : vector<1x16xf32>
    %87 = arith.mulf %81, %81 : vector<1x16xf32>
    %88 = arith.subf %86, %87 : vector<1x16xf32>
    %cst_39 = arith.constant 0.000000e+00 : f32
    %89 = vector.broadcast %cst_39 : f32 to vector<1x16xf32>
    %90 = arith.maximumf %88, %89 : vector<1x16xf32>
    %91 = vector.broadcast %81 : vector<1x16xf32> to vector<128x16xf32>
    %92 = arith.subf %77, %91 : vector<128x16xf32>
    %cst_40 = arith.constant 9.99999996E-13 : f32
    %93 = vector.broadcast %cst_40 : f32 to vector<1x16xf32>
    %94 = arith.addf %90, %93 : vector<1x16xf32>
    %95 = math.rsqrt %94 : vector<1x16xf32>
    %96 = vector.broadcast %95 : vector<1x16xf32> to vector<128x16xf32>
    %97 = arith.mulf %92, %96 : vector<128x16xf32>
    %98 = vector.broadcast %7 : vector<128x1xf32> to vector<128x16xf32>
    %99 = arith.mulf %97, %98 : vector<128x16xf32>
    %cst_41 = arith.constant dense<0.000000e+00> : vector<16xf32>
    %100 = vector.multi_reduction <add>, %99, %cst_41 [0] : vector<128x16xf32> to vector<16xf32>
    %101 = vector.shape_cast %100 : vector<16xf32> to vector<1x16xf32>
    %c0_42 = arith.constant 0 : index
    %c0_43 = arith.constant 0 : index
    %102 = memref.load %arg5[%c0_42, %c0_43] : memref<1x1xf32, #tpu.memory_space<smem>>
    %103 = vector.broadcast %102 : f32 to vector<1x16xf32>
    %104 = arith.addf %101, %103 : vector<1x16xf32>
    %105 = vector.shape_cast %104 : vector<1x16xf32> to vector<1x1x16xf32>
    %c0_44 = arith.constant 0 : index
    %c0_45 = arith.constant 0 : index
    %c0_46 = arith.constant 0 : index
    %106 = vector.load %arg6[%c0_44, %c0_45, %c0_46] : memref<1x1x16xf32, #tpu.memory_space<vmem>>, vector<1x1x16xf32>
    tpu.vector_store %arg6[%c0_44, %c0_45, %c0_46], %105 {strides = array<i32>} : memref<1x1x16xf32, #tpu.memory_space<vmem>>, vector<1x1x16xf32>,
    return
  }
  func.func @transform_0(%arg0: i32) -> (i32, i32, i32) {
    %c0_i32 = arith.constant 0 : i32
    %c0_i32_0 = arith.constant 0 : i32
    %c0_i32_1 = arith.constant 0 : i32
    return %arg0, %c0_i32, %c0_i32_0 : i32, i32, i32
  }
  func.func @transform_1(%arg0: i32) -> (i32, i32, i32) {
    %c0_i32 = arith.constant 0 : i32
    %c0_i32_0 = arith.constant 0 : i32
    %c0_i32_1 = arith.constant 0 : i32
    %c0_i32_2 = arith.constant 0 : i32
    return %c0_i32, %c0_i32_0, %c0_i32_1 : i32, i32, i32
  }
  func.func @transform_2(%arg0: i32) -> (i32, i32, i32) {
    %c0_i32 = arith.constant 0 : i32
    %c0_i32_0 = arith.constant 0 : i32
    %c0_i32_1 = arith.constant 0 : i32
    %c0_i32_2 = arith.constant 0 : i32
    return %c0_i32, %c0_i32_0, %c0_i32_1 : i32, i32, i32
  }
  func.func @transform_3(%arg0: i32) -> (i32, i32) {
    %c0_i32 = arith.constant 0 : i32
    %c0_i32_0 = arith.constant 0 : i32
    %c0_i32_1 = arith.constant 0 : i32
    return %c0_i32, %c0_i32_0 : i32, i32
  }
  func.func @transform_4(%arg0: i32) -> (i32, i32) {
    %c0_i32 = arith.constant 0 : i32
    %c0_i32_0 = arith.constant 0 : i32
    %c0_i32_1 = arith.constant 0 : i32
    return %c0_i32, %c0_i32_0 : i32, i32
  }
  func.func @transform_5(%arg0: i32) -> (i32, i32, i32) {
    %c0_i32 = arith.constant 0 : i32
    %c0_i32_0 = arith.constant 0 : i32
    %c0_i32_1 = arith.constant 0 : i32
    return %arg0, %c0_i32, %c0_i32_0 : i32, i32, i32
  }
}

</mosaic_0001>

<llo_original>
// kernel: _lambda_.1
$region0: #{_lambda_.1}
  #allocation0 [shape = 'u32[]', space=smem, size = 0x4, offset = 0x4, fixed_abs, tag = 'smem constant byte address 0x4 - core index']
  #allocation1 [shape = 'u32[144,128]{1,0:T(1,128)}', space=vmem, size = 0x12000, scoped, tag = 'internal scratch']
  #allocation2 [shape = 'f32[1,1]{1,0:T(1,128)S(6)}', space=smem, size = 0x200, scoped, tag = 'scoped memory for _lambda_.1']
  %s0 = inlined_call_operand.vmem [shape: f32[2,32,16], index: 0, kind: input, shape index: {}]
  %s1 = inlined_call_operand.hbm [shape: bf16[3,128,32], index: 1, kind: input, shape index: {}]
  %s2 = inlined_call_operand.hbm [shape: bf16[3,128,128], index: 2, kind: input, shape index: {}]
  %s3 = inlined_call_operand.hbm [shape: f32[128,5], index: 3, kind: input, shape index: {}]
  %s4 = inlined_call_operand.<no memory space> [shape: f32[1,1], index: 4, kind: input, shape index: {}]
  %s5 = inlined_call_operand.hbm [shape: f32[2,1,16], index: 5, kind: output, shape index: {}]
  %s6 = sld [smem:[#allocation0]]
  $region65: #{_lambda_.1} parent=0
    _
  %s8 = ssub.s32 1, %s6
  %s9 = scalar_select 0, %s8, %s6
  %10 = sst [smem:[#allocation2]] %s4
  $region1: #{_lambda_.1} parent=0
    #allocation3 [shape = 'u8[98304]{0}', space=vmem, size = 0x18000, scoped, tag = 'input window, operand 1, single buffered']
    #allocation4 [shape = 's32[2]{0}', space=sflag, size = 0x8, scoped, tag = 'scoped memory for _lambda_.1']
    #allocation5 [shape = 's32[2]{0}', space=sflag, size = 0x8, scoped, tag = 'scoped memory for _lambda_.1']
    #allocation6 [shape = 'u8[98304]{0}', space=vmem, size = 0x18000, scoped, tag = 'input window, operand 2, single buffered']
    #allocation7 [shape = 's32[1]{0}', space=sflag, size = 0x4, scoped, tag = 'scoped memory for _lambda_.1']
    #allocation8 [shape = 'u8[65536]{0}', space=vmem, size = 0x10000, scoped, tag = 'input window, operand 3, single buffered']
    #allocation9 [shape = 'u8[1024]{0}', space=vmem, size = 0x400, scoped, tag = 'output window, operand 0']
    %11 = vsyncpa [#allocation4], 0
    %12 = vsyncpa [#allocation7], 0
    %13 = vsyncpa [#allocation5], 0
    %s14 = scalar_lea.sflag [#allocation5], 1
    %15 = vsyncpa %s14, 0
    loop: start=0, step=1, limit=4
    $region2: #{_lambda_.1} parent=1 // loop_pre_header
      _
    $region3: #{_lambda_.1} parent=1 // loop_header
      %s17 = sphi 0, %s21
      %p18 = scmp.ge.s32.totalorder %s17, 4
      %s27 = sphi 0, %s29
      %s30 = sphi 0, %s27
      %s31 = sphi 0, %s30
      %s47 = sphi 0, %s31
      %s51 = sphi 0, %s51
      %s53 = sphi 0, %s51
      %s54 = sphi 0, %s53
      %s68 = sphi 0, %s54
      %s72 = sphi 0, %s72
      %s74 = sphi 0, %s72
      %s75 = sphi 0, %s74
      %s89 = sphi 0, %s75
      %s93 = sphi 0, %s93
      %s95 = sphi 0, %s93
      %s96 = sphi 0, %s95
      %s110 = sphi 0, %s96
      %s114 = sphi 0, %s114
      %s116 = sphi 0, %s114
      %s117 = sphi 0, %s116
      %s131 = sphi 0, %s117
      %s137 = sphi 0, %s139
      %s140 = sphi 0, %s137
      %s141 = sphi 0, %s140
      %s157 = sphi 0, %s141
    $region4: #{_lambda_.1} parent=1 // loop_header_branch
      %20 = sbr.rel (%p18) target = $region8
    $region5: #{_lambda_.1} parent=1 // loop_body
      %s22 = ssub.s32 %s17, 1
      %s23 = ssub.s32 %s17, 2
      %s24 = sadd.s32 %s17, 1
      %s25 = ssub.s32 %s17, %s24
      %p26 = scmp.eq.s32.totalorder %s25, 0
      %s28 = sadd.s32 %s27, 1
      %s29 = scalar_select %p26, %s27, %s28
      %p32 = pneg %p26
      %p33 = scmp.eq.s32.totalorder %s17, 1
      %p34 = por %p32, %p33
      %p35 = scmp.ne.s32.totalorder %s27, %s30
      %p36 = scmp.eq.s32.totalorder %s17, 0
      %p37 = por %p35, %p36
      %p38 = scmp.ne.s32.totalorder %s27, %s30
      %p39 = scmp.eq.s32.totalorder %s22, 1
      %p40 = por %p38, %p39
      %p41 = scmp.ne.s32.totalorder %s30, %s31
      %p42 = scmp.eq.s32.totalorder %s22, 0
      %p43 = por %p41, %p42
      %p44 = scmp.ne.s32.totalorder %s30, %s31
      %p45 = scmp.eq.s32.totalorder %s23, 1
      %p46 = por %p44, %p45
      %p48 = scmp.ne.s32.totalorder %s31, %s47
      %p49 = scmp.eq.s32.totalorder %s23, 0
      %p50 = por %p48, %p49
      %s52 = sadd.s32 %s51, 1
      %p55 = scmp.eq.s32.totalorder %s17, 1
      %p56 = scmp.ne.s32.totalorder %s51, %s53
      %p57 = scmp.eq.s32.totalorder %s17, 0
      %p58 = por %p56, %p57
      %p59 = scmp.ne.s32.totalorder %s51, %s53
      %p60 = scmp.eq.s32.totalorder %s22, 1
      %p61 = por %p59, %p60
      %p62 = scmp.ne.s32.totalorder %s53, %s54
      %p63 = scmp.eq.s32.totalorder %s22, 0
      %p64 = por %p62, %p63
      %p65 = scmp.ne.s32.totalorder %s53, %s54
      %p66 = scmp.eq.s32.totalorder %s23, 1
      %p67 = por %p65, %p66
      %p69 = scmp.ne.s32.totalorder %s54, %s68
      %p70 = scmp.eq.s32.totalorder %s23, 0
      %p71 = por %p69, %p70
      %s73 = sadd.s32 %s72, 1
      %p76 = scmp.eq.s32.totalorder %s17, 1
      %p77 = scmp.ne.s32.totalorder %s72, %s74
      %p78 = scmp.eq.s32.totalorder %s17, 0
      %p79 = por %p77, %p78
      %p80 = scmp.ne.s32.totalorder %s72, %s74
      %p81 = scmp.eq.s32.totalorder %s22, 1
      %p82 = por %p80, %p81
      %p83 = scmp.ne.s32.totalorder %s74, %s75
      %p84 = scmp.eq.s32.totalorder %s22, 0
      %p85 = por %p83, %p84
      %p86 = scmp.ne.s32.totalorder %s74, %s75
      %p87 = scmp.eq.s32.totalorder %s23, 1
      %p88 = por %p86, %p87
      %p90 = scmp.ne.s32.totalorder %s75, %s89
      %p91 = scmp.eq.s32.totalorder %s23, 0
      %p92 = por %p90, %p91
      %s94 = sadd.s32 %s93, 1
      %p97 = scmp.eq.s32.totalorder %s17, 1
      %p98 = scmp.ne.s32.totalorder %s93, %s95
      %p99 = scmp.eq.s32.totalorder %s17, 0
      %p100 = por %p98, %p99
      %p101 = scmp.ne.s32.totalorder %s93, %s95
      %p102 = scmp.eq.s32.totalorder %s22, 1
      %p103 = por %p101, %p102
      %p104 = scmp.ne.s32.totalorder %s95, %s96
      %p105 = scmp.eq.s32.totalorder %s22, 0
      %p106 = por %p104, %p105
      %p107 = scmp.ne.s32.totalorder %s95, %s96
      %p108 = scmp.eq.s32.totalorder %s23, 1
      %p109 = por %p107, %p108
      %p111 = scmp.ne.s32.totalorder %s96, %s110
      %p112 = scmp.eq.s32.totalorder %s23, 0
      %p113 = por %p111, %p112
      %s115 = sadd.s32 %s114, 1
      %p118 = scmp.eq.s32.totalorder %s17, 1
      %p119 = scmp.ne.s32.totalorder %s114, %s116
      %p120 = scmp.eq.s32.totalorder %s17, 0
      %p121 = por %p119, %p120
      %p122 = scmp.ne.s32.totalorder %s114, %s116
      %p123 = scmp.eq.s32.totalorder %s22, 1
      %p124 = por %p122, %p123
      %p125 = scmp.ne.s32.totalorder %s116, %s117
      %p126 = scmp.eq.s32.totalorder %s22, 0
      %p127 = por %p125, %p126
      %p128 = scmp.ne.s32.totalorder %s116, %s117
      %p129 = scmp.eq.s32.totalorder %s23, 1
      %p130 = por %p128, %p129
      %p132 = scmp.ne.s32.totalorder %s117, %s131
      %p133 = scmp.eq.s32.totalorder %s23, 0
      %p134 = por %p132, %p133
      %s135 = ssub.s32 %s17, %s24
      %p136 = scmp.eq.s32.totalorder %s135, 0
      %s138 = sadd.s32 %s137, 1
      %s139 = scalar_select %p136, %s137, %s138
      %p142 = pneg %p136
      %p143 = scmp.eq.s32.totalorder %s17, 1
      %p144 = por %p142, %p143
      %p145 = scmp.ne.s32.totalorder %s137, %s140
      %p146 = scmp.eq.s32.totalorder %s17, 0
      %p147 = por %p145, %p146
      %p148 = scmp.ne.s32.totalorder %s137, %s140
      %p149 = scmp.eq.s32.totalorder %s22, 1
      %p150 = por %p148, %p149
      %p151 = scmp.ne.s32.totalorder %s140, %s141
      %p152 = scmp.eq.s32.totalorder %s22, 0
      %p153 = por %p151, %p152
      %p154 = scmp.ne.s32.totalorder %s140, %s141
      %p155 = scmp.eq.s32.totalorder %s23, 1
      %p156 = por %p154, %p155
      %p158 = scmp.ne.s32.totalorder %s141, %s157
      %p159 = scmp.eq.s32.totalorder %s23, 0
      %p160 = por %p158, %p159
      %p161 = scmp.le.s32.totalorder 1, %s17
      %p162 = scmp.lt.s32.totalorder %s17, 3
      %p163 = pnand %p161, %p162
      %p164 = pneg %p163
      // Predicated region
      $region9: #{_lambda_.1} parent=5 // pred_check
        _
      $region10: #{_lambda_.1} parent=5 // pred_check_branch
        %166 = sbr.rel (%p163) target = $region12
      $region11: #{_lambda_.1} parent=5 // pred_region
        %s167 = ssub.s32 %s17, 1
        // Predicated region
        $region13: #{_lambda_.1} parent=11 // pred_check
          %p168 = pneg %p64
        $region14: #{_lambda_.1} parent=11 // pred_check_branch
          %170 = sbr.rel (%p168) target = $region16
        $region15: #{_lambda_.1} parent=11 // pred_region
          %s172 = ssub.s32 3072, 3072
          %173 = vsyncadd [#allocation4], %s172
          %s174 = sshll.u32 [#allocation3], 4
          %s175 = int_to_ptr.vmem [resolvable:$true] %s174
          %180 = dma.hbm_to_vmem [thread:$0]  %s1, 3072, %s175, [#allocation4], 64, 64, 4
        $region16: #{_lambda_.1} parent=11 // pred_fallthru
          _
        // Predicated region
        $region17: #{_lambda_.1} parent=11 // pred_check
          %p181 = pneg %p85
        $region18: #{_lambda_.1} parent=11 // pred_check_branch
          %183 = sbr.rel (%p181) target = $region20
        $region19: #{_lambda_.1} parent=11 // pred_region
          %s185 = ssub.s32 3072, 3072
          %186 = vsyncadd [#allocation7], %s185
          %s187 = sshll.u32 [#allocation6], 4
          %s188 = int_to_ptr.vmem [resolvable:$true] %s187
          %193 = dma.hbm_to_vmem [thread:$0]  %s2, 3072, %s188, [#allocation7], 64, 64, 4
        $region20: #{_lambda_.1} parent=11 // pred_fallthru
          _
        // Predicated region
        $region21: #{_lambda_.1} parent=11 // pred_check
          %p194 = pneg %p106
        $region22: #{_lambda_.1} parent=11 // pred_check_branch
          %196 = sbr.rel (%p194) target = $region24
        $region23: #{_lambda_.1} parent=11 // pred_region
          %s198 = ssub.s32 2048, 2048
          %199 = vsyncadd [#allocation7], %s198
          %s200 = sshll.u32 [#allocation8], 4
          %s201 = int_to_ptr.vmem [resolvable:$true] %s200
          %206 = dma.hbm_to_vmem [thread:$0]  %s3, 2048, %s201, [#allocation7], 128, 128, 8
        $region24: #{_lambda_.1} parent=11 // pred_fallthru
          _
        // Predicated region
        $region25: #{_lambda_.1} parent=11 // pred_check
          %p207 = pneg %p127
        $region26: #{_lambda_.1} parent=11 // pred_check_branch
          %209 = sbr.rel (%p207) target = $region28
        $region27: #{_lambda_.1} parent=11 // pred_region
          _
        $region28: #{_lambda_.1} parent=11 // pred_fallthru
          _
      $region12: #{_lambda_.1} parent=5 // pred_fallthru
        _
      %p210 = scmp.lt.s32.totalorder %s17, 2
      // Predicated region
      $region29: #{_lambda_.1} parent=5 // pred_check
        %p211 = pneg %p210
      $region30: #{_lambda_.1} parent=5 // pred_check_branch
        %213 = sbr.rel (%p211) target = $region32
      $region31: #{_lambda_.1} parent=5 // pred_region
        // Predicated region
        $region33: #{_lambda_.1} parent=31 // pred_check
          %p214 = pneg %p37
        $region34: #{_lambda_.1} parent=31 // pred_check_branch
          %216 = sbr.rel (%p214) target = $region36
        $region35: #{_lambda_.1} parent=31 // pred_region
          %p217 = scmp.lt.s32.totalorder %s17, 1
          %s218 = scalar_select %p217, %s17, 1
          %s219 = smul.addr %s218, 4
          %s220 = smul.addr %s219, 8
          %s221 = scalar_lea.vmem %s0, %s220
        $region36: #{_lambda_.1} parent=31 // pred_fallthru
          _
      $region32: #{_lambda_.1} parent=5 // pred_fallthru
        _
      %p222 = scmp.le.s32.totalorder 1, %s17
      %p223 = scmp.lt.s32.totalorder %s17, 3
      %p224 = pnand %p222, %p223
      %p225 = pneg %p224
      // Predicated region
      $region37: #{_lambda_.1} parent=5 // pred_check
        _
      $region38: #{_lambda_.1} parent=5 // pred_check_branch
        %227 = sbr.rel (%p224) target = $region40
      $region39: #{_lambda_.1} parent=5 // pred_region
        %s228 = ssub.s32 %s17, 1
        // Predicated region
        $region41: #{_lambda_.1} parent=39 // pred_check
          %p229 = pneg %p64
        $region42: #{_lambda_.1} parent=39 // pred_check_branch
          %231 = sbr.rel (%p229) target = $region44
        $region43: #{_lambda_.1} parent=39 // pred_region
          %232 = dma.done [#allocation4], 3072
        $region44: #{_lambda_.1} parent=39 // pred_fallthru
          _
        // Predicated region
        $region45: #{_lambda_.1} parent=39 // pred_check
          %p233 = pneg %p85
        $region46: #{_lambda_.1} parent=39 // pred_check_branch
          %235 = sbr.rel (%p233) target = $region48
        $region47: #{_lambda_.1} parent=39 // pred_region
          %236 = dma.done [#allocation7], 3072
        $region48: #{_lambda_.1} parent=39 // pred_fallthru
          _
        // Predicated region
        $region49: #{_lambda_.1} parent=39 // pred_check
          %p237 = pneg %p106
        $region50: #{_lambda_.1} parent=39 // pred_check_branch
          %239 = sbr.rel (%p237) target = $region52
        $region51: #{_lambda_.1} parent=39 // pred_region
          %240 = dma.done [#allocation7], 2048
        $region52: #{_lambda_.1} parent=39 // pred_fallthru
          _
        %p241 = scmp.lt.s32.totalorder %s22, 1
        %s242 = scalar_select %p241, %s22, 1
        %s243 = smul.addr %s242, 4
        %s244 = smul.addr %s243, 8
        %s245 = scalar_lea.vmem %s0, %s244
        %p246 = pneg %p43
        %p247 = pneg %p40
        %p248 = pneg %p64
        %p249 = pneg %p61
        %p250 = pneg %p85
        %p251 = pneg %p82
        %p252 = pneg %p106
        %p253 = pneg %p103
        %p254 = pneg %p127
        %p255 = pneg %p124
        %p256 = pneg %p153
        %p257 = pneg %p150
        %s258 = sand.u32 %s140, 1
        %s259 = scalar_lea.sflag [#allocation5], %s258
        %s260 = sand.u32 %s140, 1
        %s261 = scalar_lea.vmem [#allocation9], %s260
        %p262 = scmp.lt.s32.totalorder %s22, 1
        %s263 = scalar_select %p262, %s22, 1
        %s264 = smul.addr %s263, 4
        %s265 = smul.addr %s264, 8
        %s266 = scalar_lea.vmem %s0, %s265
        %v268 = vld [vmem:[%s266] sm:$0xff]
        %v269 = vld [vmem:[%s266 + $0x8] sm:$0xff]
        %v270 = vld [vmem:[%s266 + $0x10] sm:$0xff]
        %v271 = vld [vmem:[%s266 + $0x18] sm:$0xff]
        %v272 = vld [vmem:[#allocation8] sm:$0xff]
        %v273 = vld [vmem:[#allocation8 + $0x8] sm:$0xff]
        %v274 = vld [vmem:[#allocation8 + $0x10] sm:$0xff]
        %v275 = vld [vmem:[#allocation8 + $0x18] sm:$0xff]
        %v276 = vld [vmem:[#allocation8 + $0x20] sm:$0xff]
        %v277 = vld [vmem:[#allocation8 + $0x28] sm:$0xff]
        %v278 = vld [vmem:[#allocation8 + $0x30] sm:$0xff]
        %v279 = vld [vmem:[#allocation8 + $0x38] sm:$0xff]
        %v280 = vld [vmem:[#allocation8 + $0x40] sm:$0xff]
        %v281 = vld [vmem:[#allocation8 + $0x48] sm:$0xff]
        %v282 = vld [vmem:[#allocation8 + $0x50] sm:$0xff]
        %v283 = vld [vmem:[#allocation8 + $0x58] sm:$0xff]
        %v284 = vld [vmem:[#allocation8 + $0x60] sm:$0xff]
        %v285 = vld [vmem:[#allocation8 + $0x68] sm:$0xff]
        %v286 = vld [vmem:[#allocation8 + $0x70] sm:$0xff]
        %v287 = vld [vmem:[#allocation8 + $0x78] sm:$0xff]
        %292 = vrot.lane.b32.xlu0 %v268, 1
        %v293 = vpop.permute.xlu0 %292
        %294 = vrot.lane.b32.xlu0 %v269, 1
        %v295 = vpop.permute.xlu0 %294
        %296 = vrot.lane.b32.xlu0 %v270, 1
        %v297 = vpop.permute.xlu0 %296
        %298 = vrot.lane.b32.xlu0 %v271, 1
        %v299 = vpop.permute.xlu0 %298
        %vm304 = vcmask 7168
        %v305 = vsel %vm304, 0.0, %v293
        %v306 = vsel %vm304, 0.0, %v295
        %v307 = vsel %vm304, 0.0, %v297
        %v308 = vsel %vm304, 0.0, %v299
        %309 = vrot.lane.b32.xlu0 %v268, 127
        %v310 = vpop.permute.xlu0 %309
        %311 = vrot.lane.b32.xlu0 %v269, 127
        %v312 = vpop.permute.xlu0 %311
        %313 = vrot.lane.b32.xlu0 %v270, 127
        %v314 = vpop.permute.xlu0 %313
        %315 = vrot.lane.b32.xlu0 %v271, 127
        %v316 = vpop.permute.xlu0 %315
        %vm321 = vcmask 121856
        %v322 = vsel %vm321, %v310, 0.0
        %v323 = vsel %vm321, %v312, 0.0
        %v324 = vsel %vm321, %v314, 0.0
        %v325 = vsel %vm321, %v316, 0.0
        %v326 = vld [vmem:[#allocation3] sm:$0xf]
        %v327 = vld [vmem:[#allocation3 + $0x4] sm:$0xf]
        %v328 = vld [vmem:[#allocation3 + $0x8] sm:$0xf]
        %v329 = vld [vmem:[#allocation3 + $0xc] sm:$0xf]
        %v330 = vld [vmem:[#allocation3 + $0x10] sm:$0xf]
        %v331 = vld [vmem:[#allocation3 + $0x14] sm:$0xf]
        %v332 = vld [vmem:[#allocation3 + $0x18] sm:$0xf]
        %v333 = vld [vmem:[#allocation3 + $0x1c] sm:$0xf]
        %v334 = vld [vmem:[#allocation3 + $0x20] sm:$0xf]
        %v335 = vld [vmem:[#allocation3 + $0x24] sm:$0xf]
        %v336 = vld [vmem:[#allocation3 + $0x28] sm:$0xf]
        %v337 = vld [vmem:[#allocation3 + $0x2c] sm:$0xf]
        %v338 = vld [vmem:[#allocation3 + $0x30] sm:$0xf]
        %v339 = vld [vmem:[#allocation3 + $0x34] sm:$0xf]
        %v340 = vld [vmem:[#allocation3 + $0x38] sm:$0xf]
        %v341 = vld [vmem:[#allocation3 + $0x3c] sm:$0xf]
        %v342 = vpack.c.bf16 %v306, %v305
        %v343 = vpack.c.bf16 %v308, %v307
        %s344 = scalar_lea.vmem [#allocation3], 64
        %v345 = vld [vmem:[%s344] sm:$0xf]
        %v346 = vld [vmem:[%s344 + $0x4] sm:$0xf]
        %v347 = vld [vmem:[%s344 + $0x8] sm:$0xf]
        %v348 = vld [vmem:[%s344 + $0xc] sm:$0xf]
        %v349 = vld [vmem:[%s344 + $0x10] sm:$0xf]
        %v350 = vld [vmem:[%s344 + $0x14] sm:$0xf]
        %v351 = vld [vmem:[%s344 + $0x18] sm:$0xf]
        %v352 = vld [vmem:[%s344 + $0x1c] sm:$0xf]
        %v353 = vld [vmem:[%s344 + $0x20] sm:$0xf]
        %v354 = vld [vmem:[%s344 + $0x24] sm:$0xf]
        %v355 = vld [vmem:[%s344 + $0x28] sm:$0xf]
        %v356 = vld [vmem:[%s344 + $0x2c] sm:$0xf]
        %v357 = vld [vmem:[%s344 + $0x30] sm:$0xf]
        %v358 = vld [vmem:[%s344 + $0x34] sm:$0xf]
        %v359 = vld [vmem:[%s344 + $0x38] sm:$0xf]
        %v360 = vld [vmem:[%s344 + $0x3c] sm:$0xf]
        %v361 = vpack.c.bf16 %v269, %v268
        %v362 = vpack.c.bf16 %v271, %v270
        %v379 = vunpack.c.l.b16 %v345
        %v380 = vunpack.c.l.b16 %v346
        %v381 = vunpack.c.l.b16 %v347
        %v382 = vunpack.c.l.b16 %v348
        %v383 = vunpack.c.l.b16 %v349
        %v384 = vunpack.c.l.b16 %v350
        %v385 = vunpack.c.l.b16 %v351
        %v386 = vunpack.c.l.b16 %v352
        %v387 = vunpack.c.l.b16 %v353
        %v388 = vunpack.c.l.b16 %v354
        %v389 = vunpack.c.l.b16 %v355
        %v390 = vunpack.c.l.b16 %v356
        %v391 = vunpack.c.l.b16 %v357
        %v392 = vunpack.c.l.b16 %v358
        %v393 = vunpack.c.l.b16 %v359
        %v394 = vunpack.c.l.b16 %v360
        %v395 = vpack.c.b16 %v380, %v379
        %v396 = vpack.c.b16 %v382, %v381
        %v397 = vpack.c.b16 %v384, %v383
        %v398 = vpack.c.b16 %v386, %v385
        %v399 = vpack.c.b16 %v388, %v387
        %v400 = vpack.c.b16 %v390, %v389
        %v401 = vpack.c.b16 %v392, %v391
        %v402 = vpack.c.b16 %v394, %v393
        %vm403 = vcmask 261120
        %v405 = vsel %vm403, %v395, 0
        %v408 = vsel %vm403, %v396, 0
        %v411 = vsel %vm403, %v397, 0
        %v414 = vsel %vm403, %v398, 0
        %v417 = vsel %vm403, %v399, 0
        %v420 = vsel %vm403, %v400, 0
        %v423 = vsel %vm403, %v401, 0
        %v426 = vsel %vm403, %v402, 0
        %428 = vmatprep.subr.bf16.mxu0 0
        %429 = vmatpush1.bf16.msra.mxu0 %v361
        %430 = vmatprep.subr.bf16.mxu0 0
        %431 = vmatpush1.bf16.msra.mxu0 %v362
        %432 = vmatprep.subr.bf16.mxu0 0
        %433 = vmatpush1.bf16.msra.mxu0 0
        %434 = vmatprep.subr.bf16.mxu0 0
        %435 = vmatpush1.bf16.msra.mxu0 0
        %436 = vmatprep.subr.bf16.mxu0 0
        %437 = vmatpush1.bf16.msra.mxu0 0
        %438 = vmatprep.subr.bf16.mxu0 0
        %439 = vmatpush1.bf16.msra.mxu0 0
        %440 = vmatprep.subr.bf16.mxu0 0
        %441 = vmatpush1.bf16.msra.mxu0 0
        %442 = vmatprep.subr.bf16.mxu0 0
        %443 = vmatpush1.bf16.msra.mxu0 0
        %444 = vmatprep.subr.bf16.mxu0 0
        %445 = vmatpush1.bf16.msra.mxu0 0
        %446 = vmatprep.subr.bf16.mxu0 0
        %447 = vmatpush1.bf16.msra.mxu0 0
        %448 = vmatprep.subr.bf16.mxu0 0
        %449 = vmatpush1.bf16.msra.mxu0 0
        %450 = vmatprep.subr.bf16.mxu0 0
        %451 = vmatpush1.bf16.msra.mxu0 0
        %452 = vmatprep.subr.bf16.mxu0 0
        %453 = vmatpush1.bf16.msra.mxu0 0
        %454 = vmatprep.subr.bf16.mxu0 0
        %455 = vmatpush1.bf16.msra.mxu0 0
        %456 = vmatprep.subr.bf16.mxu0 0
        %457 = vmatpush1.bf16.msra.mxu0 0
        %458 = vmatprep.subr.bf16.mxu0 0
        %459 = vmatpush1.bf16.msra.mxu0 0
        %460 = vmatprep.mubr.bf16.mxu0 0
        %461 = vmatmul.mubr.bf16.gmra.mrb[0].mxu0 %v405
        %v462 = vpop.f32.mrb[0].mxu0
        %v463 = vadd.f32 0.0, %v462
        %v464 = vpop.f32.mrb[0].mxu0
        %v465 = vpop.f32.mrb[0].mxu0
        %v466 = vadd.f32 0.0, %v465
        %v467 = vpop.f32.mrb[0].mxu0
        %468 = vmatprep.mubr.bf16.mxu0 0
        %469 = vmatmul.mubr.bf16.gmra.mrb[0].mxu0 %v408
        %v470 = vpop.f32.mrb[0].mxu0
        %v471 = vadd.f32 0.0, %v470
        %v472 = vpop.f32.mrb[0].mxu0
        %v473 = vpop.f32.mrb[0].mxu0
        %v474 = vadd.f32 0.0, %v473
        %v475 = vpop.f32.mrb[0].mxu0
        %476 = vmatprep.mubr.bf16.mxu0 0
        %477 = vmatmul.mubr.bf16.gmra.mrb[0].mxu0 %v411
        %v478 = vpop.f32.mrb[0].mxu0
        %v479 = vadd.f32 0.0, %v478
        %v480 = vpop.f32.mrb[0].mxu0
        %v481 = vpop.f32.mrb[0].mxu0
        %v482 = vadd.f32 0.0, %v481
        %v483 = vpop.f32.mrb[0].mxu0
        %484 = vmatprep.mubr.bf16.mxu0 0
        %485 = vmatmul.mubr.bf16.gmra.mrb[0].mxu0 %v414
        %v486 = vpop.f32.mrb[0].mxu0
        %v487 = vadd.f32 0.0, %v486
        %v488 = vpop.f32.mrb[0].mxu0
        %v489 = vpop.f32.mrb[0].mxu0
        %v490 = vadd.f32 0.0, %v489
        %v491 = vpop.f32.mrb[0].mxu0
        %492 = vmatprep.mubr.bf16.mxu0 0
        %493 = vmatmul.mubr.bf16.gmra.mrb[0].mxu0 %v417
        %v494 = vpop.f32.mrb[0].mxu0
        %v495 = vadd.f32 0.0, %v494
        %v496 = vpop.f32.mrb[0].mxu0
        %v497 = vpop.f32.mrb[0].mxu0
        %v498 = vadd.f32 0.0, %v497
        %v499 = vpop.f32.mrb[0].mxu0
        %500 = vmatprep.mubr.bf16.mxu0 0
        %501 = vmatmul.mubr.bf16.gmra.mrb[0].mxu0 %v420
        %v502 = vpop.f32.mrb[0].mxu0
        %v503 = vadd.f32 0.0, %v502
        %v504 = vpop.f32.mrb[0].mxu0
        %v505 = vpop.f32.mrb[0].mxu0
        %v506 = vadd.f32 0.0, %v505
        %v507 = vpop.f32.mrb[0].mxu0
        %508 = vmatprep.mubr.bf16.mxu0 0
        %509 = vmatmul.mubr.bf16.gmra.mrb[0].mxu0 %v423
        %v510 = vpop.f32.mrb[0].mxu0
        %v511 = vadd.f32 0.0, %v510
        %v512 = vpop.f32.mrb[0].mxu0
        %v513 = vpop.f32.mrb[0].mxu0
        %v514 = vadd.f32 0.0, %v513
        %v515 = vpop.f32.mrb[0].mxu0
        %516 = vmatprep.mubr.bf16.mxu0 0
        %517 = vmatmul.mubr.bf16.gmra.mrb[0].mxu0 %v426
        %v518 = vpop.f32.mrb[0].mxu0
        %v519 = vadd.f32 0.0, %v518
        %v520 = vpop.f32.mrb[0].mxu0
        %v521 = vpop.f32.mrb[0].mxu0
        %v522 = vadd.f32 0.0, %v521
        %v523 = vpop.f32.mrb[0].mxu0
        %524 = vdwg.mxu0
        %v541 = vunpack.c.l.b16 %v326
        %v542 = vunpack.c.l.b16 %v327
        %v543 = vunpack.c.l.b16 %v328
        %v544 = vunpack.c.l.b16 %v329
        %v545 = vunpack.c.l.b16 %v330
        %v546 = vunpack.c.l.b16 %v331
        %v547 = vunpack.c.l.b16 %v332
        %v548 = vunpack.c.l.b16 %v333
        %v549 = vunpack.c.l.b16 %v334
        %v550 = vunpack.c.l.b16 %v335
        %v551 = vunpack.c.l.b16 %v336
        %v552 = vunpack.c.l.b16 %v337
        %v553 = vunpack.c.l.b16 %v338
        %v554 = vunpack.c.l.b16 %v339
        %v555 = vunpack.c.l.b16 %v340
        %v556 = vunpack.c.l.b16 %v341
        %v557 = vpack.c.b16 %v542, %v541
        %v558 = vpack.c.b16 %v544, %v543
        %v559 = vpack.c.b16 %v546, %v545
        %v560 = vpack.c.b16 %v548, %v547
        %v561 = vpack.c.b16 %v550, %v549
        %v562 = vpack.c.b16 %v552, %v551
        %v563 = vpack.c.b16 %v554, %v553
        %v564 = vpack.c.b16 %v556, %v555
        %v566 = vsel %vm403, %v557, 0
        %v569 = vsel %vm403, %v558, 0
        %v572 = vsel %vm403, %v559, 0
        %v575 = vsel %vm403, %v560, 0
        %v578 = vsel %vm403, %v561, 0
        %v581 = vsel %vm403, %v562, 0
        %v584 = vsel %vm403, %v563, 0
        %v587 = vsel %vm403, %v564, 0
        %589 = vmatprep.subr.bf16.mxu0 0
        %590 = vmatpush1.bf16.msra.mxu0 %v342
        %591 = vmatprep.subr.bf16.mxu0 0
        %592 = vmatpush1.bf16.msra.mxu0 %v343
        %593 = vmatprep.subr.bf16.mxu0 0
        %594 = vmatpush1.bf16.msra.mxu0 0
        %595 = vmatprep.subr.bf16.mxu0 0
        %596 = vmatpush1.bf16.msra.mxu0 0
        %597 = vmatprep.subr.bf16.mxu0 0
        %598 = vmatpush1.bf16.msra.mxu0 0
        %599 = vmatprep.subr.bf16.mxu0 0
        %600 = vmatpush1.bf16.msra.mxu0 0
        %601 = vmatprep.subr.bf16.mxu0 0
        %602 = vmatpush1.bf16.msra.mxu0 0
        %603 = vmatprep.subr.bf16.mxu0 0
        %604 = vmatpush1.bf16.msra.mxu0 0
        %605 = vmatprep.subr.bf16.mxu0 0
        %606 = vmatpush1.bf16.msra.mxu0 0
        %607 = vmatprep.subr.bf16.mxu0 0
        %608 = vmatpush1.bf16.msra.mxu0 0
        %609 = vmatprep.subr.bf16.mxu0 0
        %610 = vmatpush1.bf16.msra.mxu0 0
        %611 = vmatprep.subr.bf16.mxu0 0
        %612 = vmatpush1.bf16.msra.mxu0 0
        %613 = vmatprep.subr.bf16.mxu0 0
        %614 = vmatpush1.bf16.msra.mxu0 0
        %615 = vmatprep.subr.bf16.mxu0 0
        %616 = vmatpush1.bf16.msra.mxu0 0
        %617 = vmatprep.subr.bf16.mxu0 0
        %618 = vmatpush1.bf16.msra.mxu0 0
        %619 = vmatprep.subr.bf16.mxu0 0
        %620 = vmatpush1.bf16.msra.mxu0 0
        %621 = vmatprep.mubr.bf16.mxu0 0
        %622 = vmatmul.mubr.bf16.gmra.mrb[0].mxu0 %v566
        %v623 = vpop.f32.mrb[0].mxu0
        %v624 = vadd.f32 %v463, %v623
        %v625 = vpop.f32.mrb[0].mxu0
        %v626 = vpop.f32.mrb[0].mxu0
        %v627 = vadd.f32 %v466, %v626
        %v628 = vpop.f32.mrb[0].mxu0
        %629 = vmatprep.mubr.bf16.mxu0 0
        %630 = vmatmul.mubr.bf16.gmra.mrb[0].mxu0 %v569
        %v631 = vpop.f32.mrb[0].mxu0
        %v632 = vadd.f32 %v471, %v631
        %v633 = vpop.f32.mrb[0].mxu0
        %v634 = vpop.f32.mrb[0].mxu0
        %v635 = vadd.f32 %v474, %v634
        %v636 = vpop.f32.mrb[0].mxu0
        %637 = vmatprep.mubr.bf16.mxu0 0
        %638 = vmatmul.mubr.bf16.gmra.mrb[0].mxu0 %v572
        %v639 = vpop.f32.mrb[0].mxu0
        %v640 = vadd.f32 %v479, %v639
        %v641 = vpop.f32.mrb[0].mxu0
        %v642 = vpop.f32.mrb[0].mxu0
        %v643 = vadd.f32 %v482, %v642
        %v644 = vpop.f32.mrb[0].mxu0
        %645 = vmatprep.mubr.bf16.mxu0 0
        %646 = vmatmul.mubr.bf16.gmra.mrb[0].mxu0 %v575
        %v647 = vpop.f32.mrb[0].mxu0
        %v648 = vadd.f32 %v487, %v647
        %v649 = vpop.f32.mrb[0].mxu0
        %v650 = vpop.f32.mrb[0].mxu0
        %v651 = vadd.f32 %v490, %v650
        %v652 = vpop.f32.mrb[0].mxu0
        %653 = vmatprep.mubr.bf16.mxu0 0
        %654 = vmatmul.mubr.bf16.gmra.mrb[0].mxu0 %v578
        %v655 = vpop.f32.mrb[0].mxu0
        %v656 = vadd.f32 %v495, %v655
        %v657 = vpop.f32.mrb[0].mxu0
        %v658 = vpop.f32.mrb[0].mxu0
        %v659 = vadd.f32 %v498, %v658
        %v660 = vpop.f32.mrb[0].mxu0
        %661 = vmatprep.mubr.bf16.mxu0 0
        %662 = vmatmul.mubr.bf16.gmra.mrb[0].mxu0 %v581
        %v663 = vpop.f32.mrb[0].mxu0
        %v664 = vadd.f32 %v503, %v663
        %v665 = vpop.f32.mrb[0].mxu0
        %v666 = vpop.f32.mrb[0].mxu0
        %v667 = vadd.f32 %v506, %v666
        %v668 = vpop.f32.mrb[0].mxu0
        %669 = vmatprep.mubr.bf16.mxu0 0
        %670 = vmatmul.mubr.bf16.gmra.mrb[0].mxu0 %v584
        %v671 = vpop.f32.mrb[0].mxu0
        %v672 = vadd.f32 %v511, %v671
        %v673 = vpop.f32.mrb[0].mxu0
        %v674 = vpop.f32.mrb[0].mxu0
        %v675 = vadd.f32 %v514, %v674
        %v676 = vpop.f32.mrb[0].mxu0
        %677 = vmatprep.mubr.bf16.mxu0 0
        %678 = vmatmul.mubr.bf16.gmra.mrb[0].mxu0 %v587
        %v679 = vpop.f32.mrb[0].mxu0
        %v680 = vadd.f32 %v519, %v679
        %v681 = vpop.f32.mrb[0].mxu0
        %v682 = vpop.f32.mrb[0].mxu0
        %v683 = vadd.f32 %v522, %v682
        %v684 = vpop.f32.mrb[0].mxu0
        %685 = vdwg.mxu0
        %s686 = scalar_lea.vmem [#allocation3], 128
        %v687 = vld [vmem:[%s686] sm:$0xf]
        %v688 = vld [vmem:[%s686 + $0x4] sm:$0xf]
        %v689 = vld [vmem:[%s686 + $0x8] sm:$0xf]
        %v690 = vld [vmem:[%s686 + $0xc] sm:$0xf]
        %v691 = vld [vmem:[%s686 + $0x10] sm:$0xf]
        %v692 = vld [vmem:[%s686 + $0x14] sm:$0xf]
        %v693 = vld [vmem:[%s686 + $0x18] sm:$0xf]
        %v694 = vld [vmem:[%s686 + $0x1c] sm:$0xf]
        %v695 = vld [vmem:[%s686 + $0x20] sm:$0xf]
        %v696 = vld [vmem:[%s686 + $0x24] sm:$0xf]
        %v697 = vld [vmem:[%s686 + $0x28] sm:$0xf]
        %v698 = vld [vmem:[%s686 + $0x2c] sm:$0xf]
        %v699 = vld [vmem:[%s686 + $0x30] sm:$0xf]
        %v700 = vld [vmem:[%s686 + $0x34] sm:$0xf]
        %v701 = vld [vmem:[%s686 + $0x38] sm:$0xf]
        %v702 = vld [vmem:[%s686 + $0x3c] sm:$0xf]
        %v703 = vpack.c.bf16 %v323, %v322
        %v704 = vpack.c.bf16 %v325, %v324
        %v721 = vunpack.c.l.b16 %v687
        %v722 = vunpack.c.l.b16 %v688
        %v723 = vunpack.c.l.b16 %v689
        %v724 = vunpack.c.l.b16 %v690
        %v725 = vunpack.c.l.b16 %v691
        %v726 = vunpack.c.l.b16 %v692
        %v727 = vunpack.c.l.b16 %v693
        %v728 = vunpack.c.l.b16 %v694
        %v729 = vunpack.c.l.b16 %v695
        %v730 = vunpack.c.l.b16 %v696
        %v731 = vunpack.c.l.b16 %v697
        %v732 = vunpack.c.l.b16 %v698
        %v733 = vunpack.c.l.b16 %v699
        %v734 = vunpack.c.l.b16 %v700
        %v735 = vunpack.c.l.b16 %v701
        %v736 = vunpack.c.l.b16 %v702
        %v737 = vpack.c.b16 %v722, %v721
        %v738 = vpack.c.b16 %v724, %v723
        %v739 = vpack.c.b16 %v726, %v725
        %v740 = vpack.c.b16 %v728, %v727
        %v741 = vpack.c.b16 %v730, %v729
        %v742 = vpack.c.b16 %v732, %v731
        %v743 = vpack.c.b16 %v734, %v733
        %v744 = vpack.c.b16 %v736, %v735
        %v746 = vsel %vm403, %v737, 0
        %v749 = vsel %vm403, %v738, 0
        %v752 = vsel %vm403, %v739, 0
        %v755 = vsel %vm403, %v740, 0
        %v758 = vsel %vm403, %v741, 0
        %v761 = vsel %vm403, %v742, 0
        %v764 = vsel %vm403, %v743, 0
        %v767 = vsel %vm403, %v744, 0
        %769 = vmatprep.subr.bf16.mxu0 0
        %770 = vmatpush1.bf16.msra.mxu0 %v703
        %771 = vmatprep.subr.bf16.mxu0 0
        %772 = vmatpush1.bf16.msra.mxu0 %v704
        %773 = vmatprep.subr.bf16.mxu0 0
        %774 = vmatpush1.bf16.msra.mxu0 0
        %775 = vmatprep.subr.bf16.mxu0 0
        %776 = vmatpush1.bf16.msra.mxu0 0
        %777 = vmatprep.subr.bf16.mxu0 0
        %778 = vmatpush1.bf16.msra.mxu0 0
        %779 = vmatprep.subr.bf16.mxu0 0
        %780 = vmatpush1.bf16.msra.mxu0 0
        %781 = vmatprep.subr.bf16.mxu0 0
        %782 = vmatpush1.bf16.msra.mxu0 0
        %783 = vmatprep.subr.bf16.mxu0 0
        %784 = vmatpush1.bf16.msra.mxu0 0
        %785 = vmatprep.subr.bf16.mxu0 0
        %786 = vmatpush1.bf16.msra.mxu0 0
        %787 = vmatprep.subr.bf16.mxu0 0
        %788 = vmatpush1.bf16.msra.mxu0 0
        %789 = vmatprep.subr.bf16.mxu0 0
        %790 = vmatpush1.bf16.msra.mxu0 0
        %791 = vmatprep.subr.bf16.mxu0 0
        %792 = vmatpush1.bf16.msra.mxu0 0
        %793 = vmatprep.subr.bf16.mxu0 0
        %794 = vmatpush1.bf16.msra.mxu0 0
        %795 = vmatprep.subr.bf16.mxu0 0
        %796 = vmatpush1.bf16.msra.mxu0 0
        %797 = vmatprep.subr.bf16.mxu0 0
        %798 = vmatpush1.bf16.msra.mxu0 0
        %799 = vmatprep.subr.bf16.mxu0 0
        %800 = vmatpush1.bf16.msra.mxu0 0
        %801 = vmatprep.mubr.bf16.mxu0 0
        %802 = vmatmul.mubr.bf16.gmra.mrb[0].mxu0 %v746
        %v803 = vpop.f32.mrb[0].mxu0
        %v804 = vadd.f32 0.0, %v803
        %v805 = vpop.f32.mrb[0].mxu0
        %v806 = vpop.f32.mrb[0].mxu0
        %v807 = vadd.f32 0.0, %v806
        %v808 = vpop.f32.mrb[0].mxu0
        %809 = vmatprep.mubr.bf16.mxu0 0
        %810 = vmatmul.mubr.bf16.gmra.mrb[0].mxu0 %v749
        %v811 = vpop.f32.mrb[0].mxu0
        %v812 = vadd.f32 0.0, %v811
        %v813 = vpop.f32.mrb[0].mxu0
        %v814 = vpop.f32.mrb[0].mxu0
        %v815 = vadd.f32 0.0, %v814
        %v816 = vpop.f32.mrb[0].mxu0
        %817 = vmatprep.mubr.bf16.mxu0 0
        %818 = vmatmul.mubr.bf16.gmra.mrb[0].mxu0 %v752
        %v819 = vpop.f32.mrb[0].mxu0
        %v820 = vadd.f32 0.0, %v819
        %v821 = vpop.f32.mrb[0].mxu0
        %v822 = vpop.f32.mrb[0].mxu0
        %v823 = vadd.f32 0.0, %v822
        %v824 = vpop.f32.mrb[0].mxu0
        %825 = vmatprep.mubr.bf16.mxu0 0
        %826 = vmatmul.mubr.bf16.gmra.mrb[0].mxu0 %v755
        %v827 = vpop.f32.mrb[0].mxu0
        %v828 = vadd.f32 0.0, %v827
        %v829 = vpop.f32.mrb[0].mxu0
        %v830 = vpop.f32.mrb[0].mxu0
        %v831 = vadd.f32 0.0, %v830
        %v832 = vpop.f32.mrb[0].mxu0
        %833 = vmatprep.mubr.bf16.mxu0 0
        %834 = vmatmul.mubr.bf16.gmra.mrb[0].mxu0 %v758
        %v835 = vpop.f32.mrb[0].mxu0
        %v836 = vadd.f32 0.0, %v835
        %v837 = vpop.f32.mrb[0].mxu0
        %v838 = vpop.f32.mrb[0].mxu0
        %v839 = vadd.f32 0.0, %v838
        %v840 = vpop.f32.mrb[0].mxu0
        %841 = vmatprep.mubr.bf16.mxu0 0
        %842 = vmatmul.mubr.bf16.gmra.mrb[0].mxu0 %v761
        %v843 = vpop.f32.mrb[0].mxu0
        %v844 = vadd.f32 0.0, %v843
        %v845 = vpop.f32.mrb[0].mxu0
        %v846 = vpop.f32.mrb[0].mxu0
        %v847 = vadd.f32 0.0, %v846
        %v848 = vpop.f32.mrb[0].mxu0
        %849 = vmatprep.mubr.bf16.mxu0 0
        %850 = vmatmul.mubr.bf16.gmra.mrb[0].mxu0 %v764
        %v851 = vpop.f32.mrb[0].mxu0
        %v852 = vadd.f32 0.0, %v851
        %v853 = vpop.f32.mrb[0].mxu0
        %v854 = vpop.f32.mrb[0].mxu0
        %v855 = vadd.f32 0.0, %v854
        %v856 = vpop.f32.mrb[0].mxu0
        %857 = vmatprep.mubr.bf16.mxu0 0
        %858 = vmatmul.mubr.bf16.gmra.mrb[0].mxu0 %v767
        %v859 = vpop.f32.mrb[0].mxu0
        %v860 = vadd.f32 0.0, %v859
        %v861 = vpop.f32.mrb[0].mxu0
        %v862 = vpop.f32.mrb[0].mxu0
        %v863 = vadd.f32 0.0, %v862
        %v864 = vpop.f32.mrb[0].mxu0
        %865 = vdwg.mxu0
        %v866 = vadd.f32 %v624, %v804
        %v867 = vadd.f32 %v627, %v807
        %v868 = vadd.f32 %v632, %v812
        %v869 = vadd.f32 %v635, %v815
        %v870 = vadd.f32 %v640, %v820
        %v871 = vadd.f32 %v643, %v823
        %v872 = vadd.f32 %v648, %v828
        %v873 = vadd.f32 %v651, %v831
        %v874 = vadd.f32 %v656, %v836
        %v875 = vadd.f32 %v659, %v839
        %v876 = vadd.f32 %v664, %v844
        %v877 = vadd.f32 %v667, %v847
        %v878 = vadd.f32 %v672, %v852
        %v879 = vadd.f32 %v675, %v855
        %v880 = vadd.f32 %v680, %v860
        %v881 = vadd.f32 %v683, %v863
        %883 = vset.pattern.permute.xlu0 0
        %884 = vperm.xlu0 %883, %v272
        %v885 = vpop.permute.xlu0 %884
        %888 = vset.pattern.permute.xlu0 0
        %889 = vperm.xlu0 %888, %v273
        %v890 = vpop.permute.xlu0 %889
        %893 = vset.pattern.permute.xlu0 0
        %894 = vperm.xlu0 %893, %v274
        %v895 = vpop.permute.xlu0 %894
        %898 = vset.pattern.permute.xlu0 0
        %899 = vperm.xlu0 %898, %v275
        %v900 = vpop.permute.xlu0 %899
        %903 = vset.pattern.permute.xlu0 0
        %904 = vperm.xlu0 %903, %v276
        %v905 = vpop.permute.xlu0 %904
        %908 = vset.pattern.permute.xlu0 0
        %909 = vperm.xlu0 %908, %v277
        %v910 = vpop.permute.xlu0 %909
        %913 = vset.pattern.permute.xlu0 0
        %914 = vperm.xlu0 %913, %v278
        %v915 = vpop.permute.xlu0 %914
        %918 = vset.pattern.permute.xlu0 0
        %919 = vperm.xlu0 %918, %v279
        %v920 = vpop.permute.xlu0 %919
        %923 = vset.pattern.permute.xlu0 0
        %924 = vperm.xlu0 %923, %v280
        %v925 = vpop.permute.xlu0 %924
        %928 = vset.pattern.permute.xlu0 0
        %929 = vperm.xlu0 %928, %v281
        %v930 = vpop.permute.xlu0 %929
        %933 = vset.pattern.permute.xlu0 0
        %934 = vperm.xlu0 %933, %v282
        %v935 = vpop.permute.xlu0 %934
        %938 = vset.pattern.permute.xlu0 0
        %939 = vperm.xlu0 %938, %v283
        %v940 = vpop.permute.xlu0 %939
        %943 = vset.pattern.permute.xlu0 0
        %944 = vperm.xlu0 %943, %v284
        %v945 = vpop.permute.xlu0 %944
        %948 = vset.pattern.permute.xlu0 0
        %949 = vperm.xlu0 %948, %v285
        %v950 = vpop.permute.xlu0 %949
        %953 = vset.pattern.permute.xlu0 0
        %954 = vperm.xlu0 %953, %v286
        %v955 = vpop.permute.xlu0 %954
        %958 = vset.pattern.permute.xlu0 0
        %959 = vperm.xlu0 %958, %v287
        %v960 = vpop.permute.xlu0 %959
        %v962 = vadd.f32 %v866, %v885
        %v963 = vadd.f32 %v867, %v890
        %v964 = vadd.f32 %v868, %v895
        %v965 = vadd.f32 %v869, %v900
        %v966 = vadd.f32 %v870, %v905
        %v967 = vadd.f32 %v871, %v910
        %v968 = vadd.f32 %v872, %v915
        %v969 = vadd.f32 %v873, %v920
        %v970 = vadd.f32 %v874, %v925
        %v971 = vadd.f32 %v875, %v930
        %v972 = vadd.f32 %v876, %v935
        %v973 = vadd.f32 %v877, %v940
        %v974 = vadd.f32 %v878, %v945
        %v975 = vadd.f32 %v879, %v950
        %v976 = vadd.f32 %v880, %v955
        %v977 = vadd.f32 %v881, %v960
        %v978 = vmax.f32 %v962, 0.0
        %v979 = vmax.f32 %v963, 0.0
        %v980 = vmax.f32 %v964, 0.0
        %v981 = vmax.f32 %v965, 0.0
        %v982 = vmax.f32 %v966, 0.0
        %v983 = vmax.f32 %v967, 0.0
        %v984 = vmax.f32 %v968, 0.0
        %v985 = vmax.f32 %v969, 0.0
        %v986 = vmax.f32 %v970, 0.0
        %v987 = vmax.f32 %v971, 0.0
        %v988 = vmax.f32 %v972, 0.0
        %v989 = vmax.f32 %v973, 0.0
        %v990 = vmax.f32 %v974, 0.0
        %v991 = vmax.f32 %v975, 0.0
        %v992 = vmax.f32 %v976, 0.0
        %v993 = vmax.f32 %v977, 0.0
        %vm994 = vcmask 130048
        %v995 = vsel %vm994, %v978, 0.0
        %v996 = vsel %vm994, %v979, 0.0
        %v997 = vadd.f32 %v995, %v996
        %v998 = vsel %vm994, %v980, 0.0
        %v999 = vadd.f32 %v997, %v998
        %v1000 = vsel %vm994, %v981, 0.0
        %v1001 = vadd.f32 %v999, %v1000
        %v1002 = vsel %vm994, %v982, 0.0
        %v1003 = vadd.f32 %v1001, %v1002
        %v1004 = vsel %vm994, %v983, 0.0
        %v1005 = vadd.f32 %v1003, %v1004
        %v1006 = vsel %vm994, %v984, 0.0
        %v1007 = vadd.f32 %v1005, %v1006
        %v1008 = vsel %vm994, %v985, 0.0
        %v1009 = vadd.f32 %v1007, %v1008
        %v1010 = vsel %vm994, %v986, 0.0
        %v1011 = vadd.f32 %v1009, %v1010
        %v1012 = vsel %vm994, %v987, 0.0
        %v1013 = vadd.f32 %v1011, %v1012
        %v1014 = vsel %vm994, %v988, 0.0
        %v1015 = vadd.f32 %v1013, %v1014
        %v1016 = vsel %vm994, %v989, 0.0
        %v1017 = vadd.f32 %v1015, %v1016
        %v1018 = vsel %vm994, %v990, 0.0
        %v1019 = vadd.f32 %v1017, %v1018
        %v1020 = vsel %vm994, %v991, 0.0
        %v1021 = vadd.f32 %v1019, %v1020
        %v1022 = vsel %vm994, %v992, 0.0
        %v1023 = vadd.f32 %v1021, %v1022
        %v1024 = vsel %vm994, %v993, 0.0
        %v1025 = vadd.f32 %v1023, %v1024
        %v1026 = vrot.slane %v1025, 4
        %v1027 = vadd.f32 %v1025, %v1026
        %v1028 = vrot.slane %v1027, 2
        %v1029 = vadd.f32 %v1027, %v1028
        %v1030 = vrot.slane %v1029, 1
        %v1031 = vadd.f32 %v1029, %v1030
        %v1032 = vmul.f32 %v1031, 0.015625
        %v1033 = vmul.f32 %v978, %v978
        %v1034 = vmul.f32 %v979, %v979
        %v1035 = vmul.f32 %v980, %v980
        %v1036 = vmul.f32 %v981, %v981
        %v1037 = vmul.f32 %v982, %v982
        %v1038 = vmul.f32 %v983, %v983
        %v1039 = vmul.f32 %v984, %v984
        %v1040 = vmul.f32 %v985, %v985
        %v1041 = vmul.f32 %v986, %v986
        %v1042 = vmul.f32 %v987, %v987
        %v1043 = vmul.f32 %v988, %v988
        %v1044 = vmul.f32 %v989, %v989
        %v1045 = vmul.f32 %v990, %v990
        %v1046 = vmul.f32 %v991, %v991
        %v1047 = vmul.f32 %v992, %v992
        %v1048 = vmul.f32 %v993, %v993
        %v1049 = vsel %vm994, %v1033, 0.0
        %v1050 = vsel %vm994, %v1034, 0.0
        %v1051 = vadd.f32 %v1049, %v1050
        %v1052 = vsel %vm994, %v1035, 0.0
        %v1053 = vadd.f32 %v1051, %v1052
        %v1054 = vsel %vm994, %v1036, 0.0
        %v1055 = vadd.f32 %v1053, %v1054
        %v1056 = vsel %vm994, %v1037, 0.0
        %v1057 = vadd.f32 %v1055, %v1056
        %v1058 = vsel %vm994, %v1038, 0.0
        %v1059 = vadd.f32 %v1057, %v1058
        %v1060 = vsel %vm994, %v1039, 0.0
        %v1061 = vadd.f32 %v1059, %v1060
        %v1062 = vsel %vm994, %v1040, 0.0
        %v1063 = vadd.f32 %v1061, %v1062
        %v1064 = vsel %vm994, %v1041, 0.0
        %v1065 = vadd.f32 %v1063, %v1064
        %v1066 = vsel %vm994, %v1042, 0.0
        %v1067 = vadd.f32 %v1065, %v1066
        %v1068 = vsel %vm994, %v1043, 0.0
        %v1069 = vadd.f32 %v1067, %v1068
        %v1070 = vsel %vm994, %v1044, 0.0
        %v1071 = vadd.f32 %v1069, %v1070
        %v1072 = vsel %vm994, %v1045, 0.0
        %v1073 = vadd.f32 %v1071, %v1072
        %v1074 = vsel %vm994, %v1046, 0.0
        %v1075 = vadd.f32 %v1073, %v1074
        %v1076 = vsel %vm994, %v1047, 0.0
        %v1077 = vadd.f32 %v1075, %v1076
        %v1078 = vsel %vm994, %v1048, 0.0
        %v1079 = vadd.f32 %v1077, %v1078
        %v1080 = vrot.slane %v1079, 4
        %v1081 = vadd.f32 %v1079, %v1080
        %v1082 = vrot.slane %v1081, 2
        %v1083 = vadd.f32 %v1081, %v1082
        %v1084 = vrot.slane %v1083, 1
        %v1085 = vadd.f32 %v1083, %v1084
        %v1086 = vmul.f32 %v1085, 0.015625
        %v1087 = vmul.f32 %v1032, %v1032
        %v1088 = vsub.f32 %v1086, %v1087
        %v1089 = vmax.f32 %v1088, 0.0
        %v1090 = vsub.f32 %v978, %v1032
        %v1091 = vsub.f32 %v979, %v1032
        %v1092 = vsub.f32 %v980, %v1032
        %v1093 = vsub.f32 %v981, %v1032
        %v1094 = vsub.f32 %v982, %v1032
        %v1095 = vsub.f32 %v983, %v1032
        %v1096 = vsub.f32 %v984, %v1032
        %v1097 = vsub.f32 %v985, %v1032
        %v1098 = vsub.f32 %v986, %v1032
        %v1099 = vsub.f32 %v987, %v1032
        %v1100 = vsub.f32 %v988, %v1032
        %v1101 = vsub.f32 %v989, %v1032
        %v1102 = vsub.f32 %v990, %v1032
        %v1103 = vsub.f32 %v991, %v1032
        %v1104 = vsub.f32 %v992, %v1032
        %v1105 = vsub.f32 %v993, %v1032
        %v1106 = vadd.f32 %v1089, 1e-12
        %v1107 = vrsqrt.pop %v1106
        %v1108 = vmul.f32 %v1090, %v1107
        %v1109 = vmul.f32 %v1091, %v1107
        %v1110 = vmul.f32 %v1092, %v1107
        %v1111 = vmul.f32 %v1093, %v1107
        %v1112 = vmul.f32 %v1094, %v1107
        %v1113 = vmul.f32 %v1095, %v1107
        %v1114 = vmul.f32 %v1096, %v1107
        %v1115 = vmul.f32 %v1097, %v1107
        %v1116 = vmul.f32 %v1098, %v1107
        %v1117 = vmul.f32 %v1099, %v1107
        %v1118 = vmul.f32 %v1100, %v1107
        %v1119 = vmul.f32 %v1101, %v1107
        %v1120 = vmul.f32 %v1102, %v1107
        %v1121 = vmul.f32 %v1103, %v1107
        %v1122 = vmul.f32 %v1104, %v1107
        %v1123 = vmul.f32 %v1105, %v1107
        %1124 = vset.pattern.permute.xlu0 1
        %1125 = vperm.xlu0 %1124, %v272
        %v1126 = vpop.permute.xlu0 %1125
        %1128 = vset.pattern.permute.xlu0 1
        %1129 = vperm.xlu0 %1128, %v273
        %v1130 = vpop.permute.xlu0 %1129
        %1132 = vset.pattern.permute.xlu0 1
        %1133 = vperm.xlu0 %1132, %v274
        %v1134 = vpop.permute.xlu0 %1133
        %1136 = vset.pattern.permute.xlu0 1
        %1137 = vperm.xlu0 %1136, %v275
        %v1138 = vpop.permute.xlu0 %1137
        %1140 = vset.pattern.permute.xlu0 1
        %1141 = vperm.xlu0 %1140, %v276
        %v1142 = vpop.permute.xlu0 %1141
        %1144 = vset.pattern.permute.xlu0 1
        %1145 = vperm.xlu0 %1144, %v277
        %v1146 = vpop.permute.xlu0 %1145
        %1148 = vset.pattern.permute.xlu0 1
        %1149 = vperm.xlu0 %1148, %v278
        %v1150 = vpop.permute.xlu0 %1149
        %1152 = vset.pattern.permute.xlu0 1
        %1153 = vperm.xlu0 %1152, %v279
        %v1154 = vpop.permute.xlu0 %1153
        %1156 = vset.pattern.permute.xlu0 1
        %1157 = vperm.xlu0 %1156, %v280
        %v1158 = vpop.permute.xlu0 %1157
        %1160 = vset.pattern.permute.xlu0 1
        %1161 = vperm.xlu0 %1160, %v281
        %v1162 = vpop.permute.xlu0 %1161
        %1164 = vset.pattern.permute.xlu0 1
        %1165 = vperm.xlu0 %1164, %v282
        %v1166 = vpop.permute.xlu0 %1165
        %1168 = vset.pattern.permute.xlu0 1
        %1169 = vperm.xlu0 %1168, %v283
        %v1170 = vpop.permute.xlu0 %1169
        %1172 = vset.pattern.permute.xlu0 1
        %1173 = vperm.xlu0 %1172, %v284
        %v1174 = vpop.permute.xlu0 %1173
        %1176 = vset.pattern.permute.xlu0 1
        %1177 = vperm.xlu0 %1176, %v285
        %v1178 = vpop.permute.xlu0 %1177
        %1180 = vset.pattern.permute.xlu0 1
        %1181 = vperm.xlu0 %1180, %v286
        %v1182 = vpop.permute.xlu0 %1181
        %1184 = vset.pattern.permute.xlu0 1
        %1185 = vperm.xlu0 %1184, %v287
        %v1186 = vpop.permute.xlu0 %1185
        %v1188 = vmul.f32 %v1108, %v1126
        %v1189 = vmul.f32 %v1109, %v1130
        %v1190 = vmul.f32 %v1110, %v1134
        %v1191 = vmul.f32 %v1111, %v1138
        %v1192 = vmul.f32 %v1112, %v1142
        %v1193 = vmul.f32 %v1113, %v1146
        %v1194 = vmul.f32 %v1114, %v1150
        %v1195 = vmul.f32 %v1115, %v1154
        %v1196 = vmul.f32 %v1116, %v1158
        %v1197 = vmul.f32 %v1117, %v1162
        %v1198 = vmul.f32 %v1118, %v1166
        %v1199 = vmul.f32 %v1119, %v1170
        %v1200 = vmul.f32 %v1120, %v1174
        %v1201 = vmul.f32 %v1121, %v1178
        %v1202 = vmul.f32 %v1122, %v1182
        %v1203 = vmul.f32 %v1123, %v1186
        %1204 = vset.pattern.permute.xlu0 2
        %1205 = vperm.xlu0 %1204, %v272
        %v1206 = vpop.permute.xlu0 %1205
        %1208 = vset.pattern.permute.xlu0 2
        %1209 = vperm.xlu0 %1208, %v273
        %v1210 = vpop.permute.xlu0 %1209
        %1212 = vset.pattern.permute.xlu0 2
        %1213 = vperm.xlu0 %1212, %v274
        %v1214 = vpop.permute.xlu0 %1213
        %1216 = vset.pattern.permute.xlu0 2
        %1217 = vperm.xlu0 %1216, %v275
        %v1218 = vpop.permute.xlu0 %1217
        %1220 = vset.pattern.permute.xlu0 2
        %1221 = vperm.xlu0 %1220, %v276
        %v1222 = vpop.permute.xlu0 %1221
        %1224 = vset.pattern.permute.xlu0 2
        %1225 = vperm.xlu0 %1224, %v277
        %v1226 = vpop.permute.xlu0 %1225
        %1228 = vset.pattern.permute.xlu0 2
        %1229 = vperm.xlu0 %1228, %v278
        %v1230 = vpop.permute.xlu0 %1229
        %1232 = vset.pattern.permute.xlu0 2
        %1233 = vperm.xlu0 %1232, %v279
        %v1234 = vpop.permute.xlu0 %1233
        %1236 = vset.pattern.permute.xlu0 2
        %1237 = vperm.xlu0 %1236, %v280
        %v1238 = vpop.permute.xlu0 %1237
        %1240 = vset.pattern.permute.xlu0 2
        %1241 = vperm.xlu0 %1240, %v281
        %v1242 = vpop.permute.xlu0 %1241
        %1244 = vset.pattern.permute.xlu0 2
        %1245 = vperm.xlu0 %1244, %v282
        %v1246 = vpop.permute.xlu0 %1245
        %1248 = vset.pattern.permute.xlu0 2
        %1249 = vperm.xlu0 %1248, %v283
        %v1250 = vpop.permute.xlu0 %1249
        %1252 = vset.pattern.permute.xlu0 2
        %1253 = vperm.xlu0 %1252, %v284
        %v1254 = vpop.permute.xlu0 %1253
        %1256 = vset.pattern.permute.xlu0 2
        %1257 = vperm.xlu0 %1256, %v285
        %v1258 = vpop.permute.xlu0 %1257
        %1260 = vset.pattern.permute.xlu0 2
        %1261 = vperm.xlu0 %1260, %v286
        %v1262 = vpop.permute.xlu0 %1261
        %1264 = vset.pattern.permute.xlu0 2
        %1265 = vperm.xlu0 %1264, %v287
        %v1266 = vpop.permute.xlu0 %1265
        %v1268 = vadd.f32 %v1188, %v1206
        %v1269 = vadd.f32 %v1189, %v1210
        %v1270 = vadd.f32 %v1190, %v1214
        %v1271 = vadd.f32 %v1191, %v1218
        %v1272 = vadd.f32 %v1192, %v1222
        %v1273 = vadd.f32 %v1193, %v1226
        %v1274 = vadd.f32 %v1194, %v1230
        %v1275 = vadd.f32 %v1195, %v1234
        %v1276 = vadd.f32 %v1196, %v1238
        %v1277 = vadd.f32 %v1197, %v1242
        %v1278 = vadd.f32 %v1198, %v1246
        %v1279 = vadd.f32 %v1199, %v1250
        %v1280 = vadd.f32 %v1200, %v1254
        %v1281 = vadd.f32 %v1201, %v1258
        %v1282 = vadd.f32 %v1202, %v1262
        %v1283 = vadd.f32 %v1203, %v1266
        %1300 = vrot.lane.b32.xlu0 %v1268, 1
        %v1301 = vpop.permute.xlu0 %1300
        %1302 = vrot.lane.b32.xlu0 %v1269, 1
        %v1303 = vpop.permute.xlu0 %1302
        %1304 = vrot.lane.b32.xlu0 %v1270, 1
        %v1305 = vpop.permute.xlu0 %1304
        %1306 = vrot.lane.b32.xlu0 %v1271, 1
        %v1307 = vpop.permute.xlu0 %1306
        %1308 = vrot.lane.b32.xlu0 %v1272, 1
        %v1309 = vpop.permute.xlu0 %1308
        %1310 = vrot.lane.b32.xlu0 %v1273, 1
        %v1311 = vpop.permute.xlu0 %1310
        %1312 = vrot.lane.b32.xlu0 %v1274, 1
        %v1313 = vpop.permute.xlu0 %1312
        %1314 = vrot.lane.b32.xlu0 %v1275, 1
        %v1315 = vpop.permute.xlu0 %1314
        %1316 = vrot.lane.b32.xlu0 %v1276, 1
        %v1317 = vpop.permute.xlu0 %1316
        %1318 = vrot.lane.b32.xlu0 %v1277, 1
        %v1319 = vpop.permute.xlu0 %1318
        %1320 = vrot.lane.b32.xlu0 %v1278, 1
        %v1321 = vpop.permute.xlu0 %1320
        %1322 = vrot.lane.b32.xlu0 %v1279, 1
        %v1323 = vpop.permute.xlu0 %1322
        %1324 = vrot.lane.b32.xlu0 %v1280, 1
        %v1325 = vpop.permute.xlu0 %1324
        %1326 = vrot.lane.b32.xlu0 %v1281, 1
        %v1327 = vpop.permute.xlu0 %1326
        %1328 = vrot.lane.b32.xlu0 %v1282, 1
        %v1329 = vpop.permute.xlu0 %1328
        %1330 = vrot.lane.b32.xlu0 %v1283, 1
        %v1331 = vpop.permute.xlu0 %1330
        %v1348 = vsel %vm304, 0.0, %v1301
        %v1349 = vsel %vm304, 0.0, %v1303
        %v1350 = vsel %vm304, 0.0, %v1305
        %v1351 = vsel %vm304, 0.0, %v1307
        %v1352 = vsel %vm304, 0.0, %v1309
        %v1353 = vsel %vm304, 0.0, %v1311
        %v1354 = vsel %vm304, 0.0, %v1313
        %v1355 = vsel %vm304, 0.0, %v1315
        %v1356 = vsel %vm304, 0.0, %v1317
        %v1357 = vsel %vm304, 0.0, %v1319
        %v1358 = vsel %vm304, 0.0, %v1321
        %v1359 = vsel %vm304, 0.0, %v1323
        %v1360 = vsel %vm304, 0.0, %v1325
        %v1361 = vsel %vm304, 0.0, %v1327
        %v1362 = vsel %vm304, 0.0, %v1329
        %v1363 = vsel %vm304, 0.0, %v1331
        %1364 = vrot.lane.b32.xlu0 %v1268, 127
        %v1365 = vpop.permute.xlu0 %1364
        %1366 = vrot.lane.b32.xlu0 %v1269, 127
        %v1367 = vpop.permute.xlu0 %1366
        %1368 = vrot.lane.b32.xlu0 %v1270, 127
        %v1369 = vpop.permute.xlu0 %1368
        %1370 = vrot.lane.b32.xlu0 %v1271, 127
        %v1371 = vpop.permute.xlu0 %1370
        %1372 = vrot.lane.b32.xlu0 %v1272, 127
        %v1373 = vpop.permute.xlu0 %1372
        %1374 = vrot.lane.b32.xlu0 %v1273, 127
        %v1375 = vpop.permute.xlu0 %1374
        %1376 = vrot.lane.b32.xlu0 %v1274, 127
        %v1377 = vpop.permute.xlu0 %1376
        %1378 = vrot.lane.b32.xlu0 %v1275, 127
        %v1379 = vpop.permute.xlu0 %1378
        %1380 = vrot.lane.b32.xlu0 %v1276, 127
        %v1381 = vpop.permute.xlu0 %1380
        %1382 = vrot.lane.b32.xlu0 %v1277, 127
        %v1383 = vpop.permute.xlu0 %1382
        %1384 = vrot.lane.b32.xlu0 %v1278, 127
        %v1385 = vpop.permute.xlu0 %1384
        %1386 = vrot.lane.b32.xlu0 %v1279, 127
        %v1387 = vpop.permute.xlu0 %1386
        %1388 = vrot.lane.b32.xlu0 %v1280, 127
        %v1389 = vpop.permute.xlu0 %1388
        %1390 = vrot.lane.b32.xlu0 %v1281, 127
        %v1391 = vpop.permute.xlu0 %1390
        %1392 = vrot.lane.b32.xlu0 %v1282, 127
        %v1393 = vpop.permute.xlu0 %1392
        %1394 = vrot.lane.b32.xlu0 %v1283, 127
        %v1395 = vpop.permute.xlu0 %1394
        %v1412 = vsel %vm321, %v1365, 0.0
        %v1413 = vsel %vm321, %v1367, 0.0
        %v1414 = vsel %vm321, %v1369, 0.0
        %v1415 = vsel %vm321, %v1371, 0.0
        %v1416 = vsel %vm321, %v1373, 0.0
        %v1417 = vsel %vm321, %v1375, 0.0
        %v1418 = vsel %vm321, %v1377, 0.0
        %v1419 = vsel %vm321, %v1379, 0.0
        %v1420 = vsel %vm321, %v1381, 0.0
        %v1421 = vsel %vm321, %v1383, 0.0
        %v1422 = vsel %vm321, %v1385, 0.0
        %v1423 = vsel %vm321, %v1387, 0.0
        %v1424 = vsel %vm321, %v1389, 0.0
        %v1425 = vsel %vm321, %v1391, 0.0
        %v1426 = vsel %vm321, %v1393, 0.0
        %v1427 = vsel %vm321, %v1395, 0.0
        %v1428 = vld [vmem:[#allocation6] sm:$0xf]
        %v1429 = vld [vmem:[#allocation6 + $0x4] sm:$0xf]
        %v1430 = vld [vmem:[#allocation6 + $0x8] sm:$0xf]
        %v1431 = vld [vmem:[#allocation6 + $0xc] sm:$0xf]
        %v1432 = vld [vmem:[#allocation6 + $0x10] sm:$0xf]
        %v1433 = vld [vmem:[#allocation6 + $0x14] sm:$0xf]
        %v1434 = vld [vmem:[#allocation6 + $0x18] sm:$0xf]
        %v1435 = vld [vmem:[#allocation6 + $0x1c] sm:$0xf]
        %v1436 = vld [vmem:[#allocation6 + $0x20] sm:$0xf]
        %v1437 = vld [vmem:[#allocation6 + $0x24] sm:$0xf]
        %v1438 = vld [vmem:[#allocation6 + $0x28] sm:$0xf]
        %v1439 = vld [vmem:[#allocation6 + $0x2c] sm:$0xf]
        %v1440 = vld [vmem:[#allocation6 + $0x30] sm:$0xf]
        %v1441 = vld [vmem:[#allocation6 + $0x34] sm:$0xf]
        %v1442 = vld [vmem:[#allocation6 + $0x38] sm:$0xf]
        %v1443 = vld [vmem:[#allocation6 + $0x3c] sm:$0xf]
        %v1444 = vpack.c.bf16 %v1349, %v1348
        %v1445 = vpack.c.bf16 %v1351, %v1350
        %v1446 = vpack.c.bf16 %v1353, %v1352
        %v1447 = vpack.c.bf16 %v1355, %v1354
        %v1448 = vpack.c.bf16 %v1357, %v1356
        %v1449 = vpack.c.bf16 %v1359, %v1358
        %v1450 = vpack.c.bf16 %v1361, %v1360
        %v1451 = vpack.c.bf16 %v1363, %v1362
        %s1452 = scalar_lea.vmem [#allocation6], 64
        %v1453 = vld [vmem:[%s1452] sm:$0xf]
        %v1454 = vld [vmem:[%s1452 + $0x4] sm:$0xf]
        %v1455 = vld [vmem:[%s1452 + $0x8] sm:$0xf]
        %v1456 = vld [vmem:[%s1452 + $0xc] sm:$0xf]
        %v1457 = vld [vmem:[%s1452 + $0x10] sm:$0xf]
        %v1458 = vld [vmem:[%s1452 + $0x14] sm:$0xf]
        %v1459 = vld [vmem:[%s1452 + $0x18] sm:$0xf]
        %v1460 = vld [vmem:[%s1452 + $0x1c] sm:$0xf]
        %v1461 = vld [vmem:[%s1452 + $0x20] sm:$0xf]
        %v1462 = vld [vmem:[%s1452 + $0x24] sm:$0xf]
        %v1463 = vld [vmem:[%s1452 + $0x28] sm:$0xf]
        %v1464 = vld [vmem:[%s1452 + $0x2c] sm:$0xf]
        %v1465 = vld [vmem:[%s1452 + $0x30] sm:$0xf]
        %v1466 = vld [vmem:[%s1452 + $0x34] sm:$0xf]
        %v1467 = vld [vmem:[%s1452 + $0x38] sm:$0xf]
        %v1468 = vld [vmem:[%s1452 + $0x3c] sm:$0xf]
        %v1469 = vpack.c.bf16 %v1269, %v1268
        %v1470 = vpack.c.bf16 %v1271, %v1270
        %v1471 = vpack.c.bf16 %v1273, %v1272
        %v1472 = vpack.c.bf16 %v1275, %v1274
        %v1473 = vpack.c.bf16 %v1277, %v1276
        %v1474 = vpack.c.bf16 %v1279, %v1278
        %v1475 = vpack.c.bf16 %v1281, %v1280
        %v1476 = vpack.c.bf16 %v1283, %v1282
        %v1493 = vunpack.c.l.b16 %v1453
        %v1494 = vunpack.c.l.b16 %v1454
        %v1495 = vunpack.c.l.b16 %v1455
        %v1496 = vunpack.c.l.b16 %v1456
        %v1497 = vunpack.c.l.b16 %v1457
        %v1498 = vunpack.c.l.b16 %v1458
        %v1499 = vunpack.c.l.b16 %v1459
        %v1500 = vunpack.c.l.b16 %v1460
        %v1501 = vunpack.c.l.b16 %v1461
        %v1502 = vunpack.c.l.b16 %v1462
        %v1503 = vunpack.c.l.b16 %v1463
        %v1504 = vunpack.c.l.b16 %v1464
        %v1505 = vunpack.c.l.b16 %v1465
        %v1506 = vunpack.c.l.b16 %v1466
        %v1507 = vunpack.c.l.b16 %v1467
        %v1508 = vunpack.c.l.b16 %v1468
        %v1509 = vpack.c.b16 %v1494, %v1493
        %v1510 = vpack.c.b16 %v1496, %v1495
        %v1511 = vpack.c.b16 %v1498, %v1497
        %v1512 = vpack.c.b16 %v1500, %v1499
        %v1513 = vpack.c.b16 %v1502, %v1501
        %v1514 = vpack.c.b16 %v1504, %v1503
        %v1515 = vpack.c.b16 %v1506, %v1505
        %v1516 = vpack.c.b16 %v1508, %v1507
        %1525 = vmatprep.subr.bf16.mxu0 0
        %1526 = vmatpush1.bf16.msra.mxu0 %v1469
        %1527 = vmatprep.subr.bf16.mxu0 0
        %1528 = vmatpush1.bf16.msra.mxu0 %v1470
        %1529 = vmatprep.subr.bf16.mxu0 0
        %1530 = vmatpush1.bf16.msra.mxu0 %v1471
        %1531 = vmatprep.subr.bf16.mxu0 0
        %1532 = vmatpush1.bf16.msra.mxu0 %v1472
        %1533 = vmatprep.subr.bf16.mxu0 0
        %1534 = vmatpush1.bf16.msra.mxu0 %v1473
        %1535 = vmatprep.subr.bf16.mxu0 0
        %1536 = vmatpush1.bf16.msra.mxu0 %v1474
        %1537 = vmatprep.subr.bf16.mxu0 0
        %1538 = vmatpush1.bf16.msra.mxu0 %v1475
        %1539 = vmatprep.subr.bf16.mxu0 0
        %1540 = vmatpush1.bf16.msra.mxu0 %v1476
        %1541 = vmatprep.subr.bf16.mxu0 0
        %1542 = vmatpush1.bf16.msra.mxu0 0
        %1543 = vmatprep.subr.bf16.mxu0 0
        %1544 = vmatpush1.bf16.msra.mxu0 0
        %1545 = vmatprep.subr.bf16.mxu0 0
        %1546 = vmatpush1.bf16.msra.mxu0 0
        %1547 = vmatprep.subr.bf16.mxu0 0
        %1548 = vmatpush1.bf16.msra.mxu0 0
        %1549 = vmatprep.subr.bf16.mxu0 0
        %1550 = vmatpush1.bf16.msra.mxu0 0
        %1551 = vmatprep.subr.bf16.mxu0 0
        %1552 = vmatpush1.bf16.msra.mxu0 0
        %1553 = vmatprep.subr.bf16.mxu0 0
        %1554 = vmatpush1.bf16.msra.mxu0 0
        %1555 = vmatprep.subr.bf16.mxu0 0
        %1556 = vmatpush1.bf16.msra.mxu0 0
        %1557 = vmatprep.mubr.bf16.mxu0 0
        %1558 = vmatmul.mubr.bf16.gmra.mrb[0].mxu0 %v1509
        %v1559 = vpop.f32.mrb[0].mxu0
        %v1560 = vadd.f32 0.0, %v1559
        %v1561 = vpop.f32.mrb[0].mxu0
        %v1562 = vpop.f32.mrb[0].mxu0
        %v1563 = vadd.f32 0.0, %v1562
        %v1564 = vpop.f32.mrb[0].mxu0
        %1565 = vmatprep.mubr.bf16.mxu0 0
        %1566 = vmatmul.mubr.bf16.gmra.mrb[0].mxu0 %v1510
        %v1567 = vpop.f32.mrb[0].mxu0
        %v1568 = vadd.f32 0.0, %v1567
        %v1569 = vpop.f32.mrb[0].mxu0
        %v1570 = vpop.f32.mrb[0].mxu0
        %v1571 = vadd.f32 0.0, %v1570
        %v1572 = vpop.f32.mrb[0].mxu0
        %1573 = vmatprep.mubr.bf16.mxu0 0
        %1574 = vmatmul.mubr.bf16.gmra.mrb[0].mxu0 %v1511
        %v1575 = vpop.f32.mrb[0].mxu0
        %v1576 = vadd.f32 0.0, %v1575
        %v1577 = vpop.f32.mrb[0].mxu0
        %v1578 = vpop.f32.mrb[0].mxu0
        %v1579 = vadd.f32 0.0, %v1578
        %v1580 = vpop.f32.mrb[0].mxu0
        %1581 = vmatprep.mubr.bf16.mxu0 0
        %1582 = vmatmul.mubr.bf16.gmra.mrb[0].mxu0 %v1512
        %v1583 = vpop.f32.mrb[0].mxu0
        %v1584 = vadd.f32 0.0, %v1583
        %v1585 = vpop.f32.mrb[0].mxu0
        %v1586 = vpop.f32.mrb[0].mxu0
        %v1587 = vadd.f32 0.0, %v1586
        %v1588 = vpop.f32.mrb[0].mxu0
        %1589 = vmatprep.mubr.bf16.mxu0 0
        %1590 = vmatmul.mubr.bf16.gmra.mrb[0].mxu0 %v1513
        %v1591 = vpop.f32.mrb[0].mxu0
        %v1592 = vadd.f32 0.0, %v1591
        %v1593 = vpop.f32.mrb[0].mxu0
        %v1594 = vpop.f32.mrb[0].mxu0
        %v1595 = vadd.f32 0.0, %v1594
        %v1596 = vpop.f32.mrb[0].mxu0
        %1597 = vmatprep.mubr.bf16.mxu0 0
        %1598 = vmatmul.mubr.bf16.gmra.mrb[0].mxu0 %v1514
        %v1599 = vpop.f32.mrb[0].mxu0
        %v1600 = vadd.f32 0.0, %v1599
        %v1601 = vpop.f32.mrb[0].mxu0
        %v1602 = vpop.f32.mrb[0].mxu0
        %v1603 = vadd.f32 0.0, %v1602
        %v1604 = vpop.f32.mrb[0].mxu0
        %1605 = vmatprep.mubr.bf16.mxu0 0
        %1606 = vmatmul.mubr.bf16.gmra.mrb[0].mxu0 %v1515
        %v1607 = vpop.f32.mrb[0].mxu0
        %v1608 = vadd.f32 0.0, %v1607
        %v1609 = vpop.f32.mrb[0].mxu0
        %v1610 = vpop.f32.mrb[0].mxu0
        %v1611 = vadd.f32 0.0, %v1610
        %v1612 = vpop.f32.mrb[0].mxu0
        %1613 = vmatprep.mubr.bf16.mxu0 0
        %1614 = vmatmul.mubr.bf16.gmra.mrb[0].mxu0 %v1516
        %v1615 = vpop.f32.mrb[0].mxu0
        %v1616 = vadd.f32 0.0, %v1615
        %v1617 = vpop.f32.mrb[0].mxu0
        %v1618 = vpop.f32.mrb[0].mxu0
        %v1619 = vadd.f32 0.0, %v1618
        %v1620 = vpop.f32.mrb[0].mxu0
        %1621 = vdwg.mxu0
        %v1638 = vunpack.c.l.b16 %v1428
        %v1639 = vunpack.c.l.b16 %v1429
        %v1640 = vunpack.c.l.b16 %v1430
        %v1641 = vunpack.c.l.b16 %v1431
        %v1642 = vunpack.c.l.b16 %v1432
        %v1643 = vunpack.c.l.b16 %v1433
        %v1644 = vunpack.c.l.b16 %v1434
        %v1645 = vunpack.c.l.b16 %v1435
        %v1646 = vunpack.c.l.b16 %v1436
        %v1647 = vunpack.c.l.b16 %v1437
        %v1648 = vunpack.c.l.b16 %v1438
        %v1649 = vunpack.c.l.b16 %v1439
        %v1650 = vunpack.c.l.b16 %v1440
        %v1651 = vunpack.c.l.b16 %v1441
        %v1652 = vunpack.c.l.b16 %v1442
        %v1653 = vunpack.c.l.b16 %v1443
        %v1654 = vpack.c.b16 %v1639, %v1638
        %v1655 = vpack.c.b16 %v1641, %v1640
        %v1656 = vpack.c.b16 %v1643, %v1642
        %v1657 = vpack.c.b16 %v1645, %v1644
        %v1658 = vpack.c.b16 %v1647, %v1646
        %v1659 = vpack.c.b16 %v1649, %v1648
        %v1660 = vpack.c.b16 %v1651, %v1650
        %v1661 = vpack.c.b16 %v1653, %v1652
        %1670 = vmatprep.subr.bf16.mxu0 0
        %1671 = vmatpush1.bf16.msra.mxu0 %v1444
        %1672 = vmatprep.subr.bf16.mxu0 0
        %1673 = vmatpush1.bf16.msra.mxu0 %v1445
        %1674 = vmatprep.subr.bf16.mxu0 0
        %1675 = vmatpush1.bf16.msra.mxu0 %v1446
        %1676 = vmatprep.subr.bf16.mxu0 0
        %1677 = vmatpush1.bf16.msra.mxu0 %v1447
        %1678 = vmatprep.subr.bf16.mxu0 0
        %1679 = vmatpush1.bf16.msra.mxu0 %v1448
        %1680 = vmatprep.subr.bf16.mxu0 0
        %1681 = vmatpush1.bf16.msra.mxu0 %v1449
        %1682 = vmatprep.subr.bf16.mxu0 0
        %1683 = vmatpush1.bf16.msra.mxu0 %v1450
        %1684 = vmatprep.subr.bf16.mxu0 0
        %1685 = vmatpush1.bf16.msra.mxu0 %v1451
        %1686 = vmatprep.subr.bf16.mxu0 0
        %1687 = vmatpush1.bf16.msra.mxu0 0
        %1688 = vmatprep.subr.bf16.mxu0 0
        %1689 = vmatpush1.bf16.msra.mxu0 0
        %1690 = vmatprep.subr.bf16.mxu0 0
        %1691 = vmatpush1.bf16.msra.mxu0 0
        %1692 = vmatprep.subr.bf16.mxu0 0
        %1693 = vmatpush1.bf16.msra.mxu0 0
        %1694 = vmatprep.subr.bf16.mxu0 0
        %1695 = vmatpush1.bf16.msra.mxu0 0
        %1696 = vmatprep.subr.bf16.mxu0 0
        %1697 = vmatpush1.bf16.msra.mxu0 0
        %1698 = vmatprep.subr.bf16.mxu0 0
        %1699 = vmatpush1.bf16.msra.mxu0 0
        %1700 = vmatprep.subr.bf16.mxu0 0
        %1701 = vmatpush1.bf16.msra.mxu0 0
        %1702 = vmatprep.mubr.bf16.mxu0 0
        %1703 = vmatmul.mubr.bf16.gmra.mrb[0].mxu0 %v1654
        %v1704 = vpop.f32.mrb[0].mxu0
        %v1705 = vadd.f32 %v1560, %v1704
        %v1706 = vpop.f32.mrb[0].mxu0
        %v1707 = vpop.f32.mrb[0].mxu0
        %v1708 = vadd.f32 %v1563, %v1707
        %v1709 = vpop.f32.mrb[0].mxu0
        %1710 = vmatprep.mubr.bf16.mxu0 0
        %1711 = vmatmul.mubr.bf16.gmra.mrb[0].mxu0 %v1655
        %v1712 = vpop.f32.mrb[0].mxu0
        %v1713 = vadd.f32 %v1568, %v1712
        %v1714 = vpop.f32.mrb[0].mxu0
        %v1715 = vpop.f32.mrb[0].mxu0
        %v1716 = vadd.f32 %v1571, %v1715
        %v1717 = vpop.f32.mrb[0].mxu0
        %1718 = vmatprep.mubr.bf16.mxu0 0
        %1719 = vmatmul.mubr.bf16.gmra.mrb[0].mxu0 %v1656
        %v1720 = vpop.f32.mrb[0].mxu0
        %v1721 = vadd.f32 %v1576, %v1720
        %v1722 = vpop.f32.mrb[0].mxu0
        %v1723 = vpop.f32.mrb[0].mxu0
        %v1724 = vadd.f32 %v1579, %v1723
        %v1725 = vpop.f32.mrb[0].mxu0
        %1726 = vmatprep.mubr.bf16.mxu0 0
        %1727 = vmatmul.mubr.bf16.gmra.mrb[0].mxu0 %v1657
        %v1728 = vpop.f32.mrb[0].mxu0
        %v1729 = vadd.f32 %v1584, %v1728
        %v1730 = vpop.f32.mrb[0].mxu0
        %v1731 = vpop.f32.mrb[0].mxu0
        %v1732 = vadd.f32 %v1587, %v1731
        %v1733 = vpop.f32.mrb[0].mxu0
        %1734 = vmatprep.mubr.bf16.mxu0 0
        %1735 = vmatmul.mubr.bf16.gmra.mrb[0].mxu0 %v1658
        %v1736 = vpop.f32.mrb[0].mxu0
        %v1737 = vadd.f32 %v1592, %v1736
        %v1738 = vpop.f32.mrb[0].mxu0
        %v1739 = vpop.f32.mrb[0].mxu0
        %v1740 = vadd.f32 %v1595, %v1739
        %v1741 = vpop.f32.mrb[0].mxu0
        %1742 = vmatprep.mubr.bf16.mxu0 0
        %1743 = vmatmul.mubr.bf16.gmra.mrb[0].mxu0 %v1659
        %v1744 = vpop.f32.mrb[0].mxu0
        %v1745 = vadd.f32 %v1600, %v1744
        %v1746 = vpop.f32.mrb[0].mxu0
        %v1747 = vpop.f32.mrb[0].mxu0
        %v1748 = vadd.f32 %v1603, %v1747
        %v1749 = vpop.f32.mrb[0].mxu0
        %1750 = vmatprep.mubr.bf16.mxu0 0
        %1751 = vmatmul.mubr.bf16.gmra.mrb[0].mxu0 %v1660
        %v1752 = vpop.f32.mrb[0].mxu0
        %v1753 = vadd.f32 %v1608, %v1752
        %v1754 = vpop.f32.mrb[0].mxu0
        %v1755 = vpop.f32.mrb[0].mxu0
        %v1756 = vadd.f32 %v1611, %v1755
        %v1757 = vpop.f32.mrb[0].mxu0
        %1758 = vmatprep.mubr.bf16.mxu0 0
        %1759 = vmatmul.mubr.bf16.gmra.mrb[0].mxu0 %v1661
        %v1760 = vpop.f32.mrb[0].mxu0
        %v1761 = vadd.f32 %v1616, %v1760
        %v1762 = vpop.f32.mrb[0].mxu0
        %v1763 = vpop.f32.mrb[0].mxu0
        %v1764 = vadd.f32 %v1619, %v1763
        %v1765 = vpop.f32.mrb[0].mxu0
        %1766 = vdwg.mxu0
        %s1767 = scalar_lea.vmem [#allocation6], 128
        %v1768 = vld [vmem:[%s1767] sm:$0xf]
        %v1769 = vld [vmem:[%s1767 + $0x4] sm:$0xf]
        %v1770 = vld [vmem:[%s1767 + $0x8] sm:$0xf]
        %v1771 = vld [vmem:[%s1767 + $0xc] sm:$0xf]
        %v1772 = vld [vmem:[%s1767 + $0x10] sm:$0xf]
        %v1773 = vld [vmem:[%s1767 + $0x14] sm:$0xf]
        %v1774 = vld [vmem:[%s1767 + $0x18] sm:$0xf]
        %v1775 = vld [vmem:[%s1767 + $0x1c] sm:$0xf]
        %v1776 = vld [vmem:[%s1767 + $0x20] sm:$0xf]
        %v1777 = vld [vmem:[%s1767 + $0x24] sm:$0xf]
        %v1778 = vld [vmem:[%s1767 + $0x28] sm:$0xf]
        %v1779 = vld [vmem:[%s1767 + $0x2c] sm:$0xf]
        %v1780 = vld [vmem:[%s1767 + $0x30] sm:$0xf]
        %v1781 = vld [vmem:[%s1767 + $0x34] sm:$0xf]
        %v1782 = vld [vmem:[%s1767 + $0x38] sm:$0xf]
        %v1783 = vld [vmem:[%s1767 + $0x3c] sm:$0xf]
        %v1784 = vpack.c.bf16 %v1413, %v1412
        %v1785 = vpack.c.bf16 %v1415, %v1414
        %v1786 = vpack.c.bf16 %v1417, %v1416
        %v1787 = vpack.c.bf16 %v1419, %v1418
        %v1788 = vpack.c.bf16 %v1421, %v1420
        %v1789 = vpack.c.bf16 %v1423, %v1422
        %v1790 = vpack.c.bf16 %v1425, %v1424
        %v1791 = vpack.c.bf16 %v1427, %v1426
        %v1808 = vunpack.c.l.b16 %v1768
        %v1809 = vunpack.c.l.b16 %v1769
        %v1810 = vunpack.c.l.b16 %v1770
        %v1811 = vunpack.c.l.b16 %v1771
        %v1812 = vunpack.c.l.b16 %v1772
        %v1813 = vunpack.c.l.b16 %v1773
        %v1814 = vunpack.c.l.b16 %v1774
        %v1815 = vunpack.c.l.b16 %v1775
        %v1816 = vunpack.c.l.b16 %v1776
        %v1817 = vunpack.c.l.b16 %v1777
        %v1818 = vunpack.c.l.b16 %v1778
        %v1819 = vunpack.c.l.b16 %v1779
        %v1820 = vunpack.c.l.b16 %v1780
        %v1821 = vunpack.c.l.b16 %v1781
        %v1822 = vunpack.c.l.b16 %v1782
        %v1823 = vunpack.c.l.b16 %v1783
        %v1824 = vpack.c.b16 %v1809, %v1808
        %v1825 = vpack.c.b16 %v1811, %v1810
        %v1826 = vpack.c.b16 %v1813, %v1812
        %v1827 = vpack.c.b16 %v1815, %v1814
        %v1828 = vpack.c.b16 %v1817, %v1816
        %v1829 = vpack.c.b16 %v1819, %v1818
        %v1830 = vpack.c.b16 %v1821, %v1820
        %v1831 = vpack.c.b16 %v1823, %v1822
        %1840 = vmatprep.subr.bf16.mxu0 0
        %1841 = vmatpush1.bf16.msra.mxu0 %v1784
        %1842 = vmatprep.subr.bf16.mxu0 0
        %1843 = vmatpush1.bf16.msra.mxu0 %v1785
        %1844 = vmatprep.subr.bf16.mxu0 0
        %1845 = vmatpush1.bf16.msra.mxu0 %v1786
        %1846 = vmatprep.subr.bf16.mxu0 0
        %1847 = vmatpush1.bf16.msra.mxu0 %v1787
        %1848 = vmatprep.subr.bf16.mxu0 0
        %1849 = vmatpush1.bf16.msra.mxu0 %v1788
        %1850 = vmatprep.subr.bf16.mxu0 0
        %1851 = vmatpush1.bf16.msra.mxu0 %v1789
        %1852 = vmatprep.subr.bf16.mxu0 0
        %1853 = vmatpush1.bf16.msra.mxu0 %v1790
        %1854 = vmatprep.subr.bf16.mxu0 0
        %1855 = vmatpush1.bf16.msra.mxu0 %v1791
        %1856 = vmatprep.subr.bf16.mxu0 0
        %1857 = vmatpush1.bf16.msra.mxu0 0
        %1858 = vmatprep.subr.bf16.mxu0 0
        %1859 = vmatpush1.bf16.msra.mxu0 0
        %1860 = vmatprep.subr.bf16.mxu0 0
        %1861 = vmatpush1.bf16.msra.mxu0 0
        %1862 = vmatprep.subr.bf16.mxu0 0
        %1863 = vmatpush1.bf16.msra.mxu0 0
        %1864 = vmatprep.subr.bf16.mxu0 0
        %1865 = vmatpush1.bf16.msra.mxu0 0
        %1866 = vmatprep.subr.bf16.mxu0 0
        %1867 = vmatpush1.bf16.msra.mxu0 0
        %1868 = vmatprep.subr.bf16.mxu0 0
        %1869 = vmatpush1.bf16.msra.mxu0 0
        %1870 = vmatprep.subr.bf16.mxu0 0
        %1871 = vmatpush1.bf16.msra.mxu0 0
        %1872 = vmatprep.mubr.bf16.mxu0 0
        %1873 = vmatmul.mubr.bf16.gmra.mrb[0].mxu0 %v1824
        %v1874 = vpop.f32.mrb[0].mxu0
        %v1875 = vadd.f32 0.0, %v1874
        %v1876 = vpop.f32.mrb[0].mxu0
        %v1877 = vpop.f32.mrb[0].mxu0
        %v1878 = vadd.f32 0.0, %v1877
        %v1879 = vpop.f32.mrb[0].mxu0
        %1880 = vmatprep.mubr.bf16.mxu0 0
        %1881 = vmatmul.mubr.bf16.gmra.mrb[0].mxu0 %v1825
        %v1882 = vpop.f32.mrb[0].mxu0
        %v1883 = vadd.f32 0.0, %v1882
        %v1884 = vpop.f32.mrb[0].mxu0
        %v1885 = vpop.f32.mrb[0].mxu0
        %v1886 = vadd.f32 0.0, %v1885
        %v1887 = vpop.f32.mrb[0].mxu0
        %1888 = vmatprep.mubr.bf16.mxu0 0
        %1889 = vmatmul.mubr.bf16.gmra.mrb[0].mxu0 %v1826
        %v1890 = vpop.f32.mrb[0].mxu0
        %v1891 = vadd.f32 0.0, %v1890
        %v1892 = vpop.f32.mrb[0].mxu0
        %v1893 = vpop.f32.mrb[0].mxu0
        %v1894 = vadd.f32 0.0, %v1893
        %v1895 = vpop.f32.mrb[0].mxu0
        %1896 = vmatprep.mubr.bf16.mxu0 0
        %1897 = vmatmul.mubr.bf16.gmra.mrb[0].mxu0 %v1827
        %v1898 = vpop.f32.mrb[0].mxu0
        %v1899 = vadd.f32 0.0, %v1898
        %v1900 = vpop.f32.mrb[0].mxu0
        %v1901 = vpop.f32.mrb[0].mxu0
        %v1902 = vadd.f32 0.0, %v1901
        %v1903 = vpop.f32.mrb[0].mxu0
        %1904 = vmatprep.mubr.bf16.mxu0 0
        %1905 = vmatmul.mubr.bf16.gmra.mrb[0].mxu0 %v1828
        %v1906 = vpop.f32.mrb[0].mxu0
        %v1907 = vadd.f32 0.0, %v1906
        %v1908 = vpop.f32.mrb[0].mxu0
        %v1909 = vpop.f32.mrb[0].mxu0
        %v1910 = vadd.f32 0.0, %v1909
        %v1911 = vpop.f32.mrb[0].mxu0
        %1912 = vmatprep.mubr.bf16.mxu0 0
        %1913 = vmatmul.mubr.bf16.gmra.mrb[0].mxu0 %v1829
        %v1914 = vpop.f32.mrb[0].mxu0
        %v1915 = vadd.f32 0.0, %v1914
        %v1916 = vpop.f32.mrb[0].mxu0
        %v1917 = vpop.f32.mrb[0].mxu0
        %v1918 = vadd.f32 0.0, %v1917
        %v1919 = vpop.f32.mrb[0].mxu0
        %1920 = vmatprep.mubr.bf16.mxu0 0
        %1921 = vmatmul.mubr.bf16.gmra.mrb[0].mxu0 %v1830
        %v1922 = vpop.f32.mrb[0].mxu0
        %v1923 = vadd.f32 0.0, %v1922
        %v1924 = vpop.f32.mrb[0].mxu0
        %v1925 = vpop.f32.mrb[0].mxu0
        %v1926 = vadd.f32 0.0, %v1925
        %v1927 = vpop.f32.mrb[0].mxu0
        %1928 = vmatprep.mubr.bf16.mxu0 0
        %1929 = vmatmul.mubr.bf16.gmra.mrb[0].mxu0 %v1831
        %v1930 = vpop.f32.mrb[0].mxu0
        %v1931 = vadd.f32 0.0, %v1930
        %v1932 = vpop.f32.mrb[0].mxu0
        %v1933 = vpop.f32.mrb[0].mxu0
        %v1934 = vadd.f32 0.0, %v1933
        %v1935 = vpop.f32.mrb[0].mxu0
        %1936 = vdwg.mxu0
        %v1937 = vadd.f32 %v1705, %v1875
        %v1938 = vadd.f32 %v1708, %v1878
        %v1939 = vadd.f32 %v1713, %v1883
        %v1940 = vadd.f32 %v1716, %v1886
        %v1941 = vadd.f32 %v1721, %v1891
        %v1942 = vadd.f32 %v1724, %v1894
        %v1943 = vadd.f32 %v1729, %v1899
        %v1944 = vadd.f32 %v1732, %v1902
        %v1945 = vadd.f32 %v1737, %v1907
        %v1946 = vadd.f32 %v1740, %v1910
        %v1947 = vadd.f32 %v1745, %v1915
        %v1948 = vadd.f32 %v1748, %v1918
        %v1949 = vadd.f32 %v1753, %v1923
        %v1950 = vadd.f32 %v1756, %v1926
        %v1951 = vadd.f32 %v1761, %v1931
        %v1952 = vadd.f32 %v1764, %v1934
        %1953 = vset.pattern.permute.xlu0 3
        %1954 = vperm.xlu0 %1953, %v272
        %v1955 = vpop.permute.xlu0 %1954
        %1957 = vset.pattern.permute.xlu0 3
        %1958 = vperm.xlu0 %1957, %v273
        %v1959 = vpop.permute.xlu0 %1958
        %1961 = vset.pattern.permute.xlu0 3
        %1962 = vperm.xlu0 %1961, %v274
        %v1963 = vpop.permute.xlu0 %1962
        %1965 = vset.pattern.permute.xlu0 3
        %1966 = vperm.xlu0 %1965, %v275
        %v1967 = vpop.permute.xlu0 %1966
        %1969 = vset.pattern.permute.xlu0 3
        %1970 = vperm.xlu0 %1969, %v276
        %v1971 = vpop.permute.xlu0 %1970
        %1973 = vset.pattern.permute.xlu0 3
        %1974 = vperm.xlu0 %1973, %v277
        %v1975 = vpop.permute.xlu0 %1974
        %1977 = vset.pattern.permute.xlu0 3
        %1978 = vperm.xlu0 %1977, %v278
        %v1979 = vpop.permute.xlu0 %1978
        %1981 = vset.pattern.permute.xlu0 3
        %1982 = vperm.xlu0 %1981, %v279
        %v1983 = vpop.permute.xlu0 %1982
        %1985 = vset.pattern.permute.xlu0 3
        %1986 = vperm.xlu0 %1985, %v280
        %v1987 = vpop.permute.xlu0 %1986
        %1989 = vset.pattern.permute.xlu0 3
        %1990 = vperm.xlu0 %1989, %v281
        %v1991 = vpop.permute.xlu0 %1990
        %1993 = vset.pattern.permute.xlu0 3
        %1994 = vperm.xlu0 %1993, %v282
        %v1995 = vpop.permute.xlu0 %1994
        %1997 = vset.pattern.permute.xlu0 3
        %1998 = vperm.xlu0 %1997, %v283
        %v1999 = vpop.permute.xlu0 %1998
        %2001 = vset.pattern.permute.xlu0 3
        %2002 = vperm.xlu0 %2001, %v284
        %v2003 = vpop.permute.xlu0 %2002
        %2005 = vset.pattern.permute.xlu0 3
        %2006 = vperm.xlu0 %2005, %v285
        %v2007 = vpop.permute.xlu0 %2006
        %2009 = vset.pattern.permute.xlu0 3
        %2010 = vperm.xlu0 %2009, %v286
        %v2011 = vpop.permute.xlu0 %2010
        %2013 = vset.pattern.permute.xlu0 3
        %2014 = vperm.xlu0 %2013, %v287
        %v2015 = vpop.permute.xlu0 %2014
        %v2017 = vadd.f32 %v1937, %v1955
        %v2018 = vadd.f32 %v1938, %v1959
        %v2019 = vadd.f32 %v1939, %v1963
        %v2020 = vadd.f32 %v1940, %v1967
        %v2021 = vadd.f32 %v1941, %v1971
        %v2022 = vadd.f32 %v1942, %v1975
        %v2023 = vadd.f32 %v1943, %v1979
        %v2024 = vadd.f32 %v1944, %v1983
        %v2025 = vadd.f32 %v1945, %v1987
        %v2026 = vadd.f32 %v1946, %v1991
        %v2027 = vadd.f32 %v1947, %v1995
        %v2028 = vadd.f32 %v1948, %v1999
        %v2029 = vadd.f32 %v1949, %v2003
        %v2030 = vadd.f32 %v1950, %v2007
        %v2031 = vadd.f32 %v1951, %v2011
        %v2032 = vadd.f32 %v1952, %v2015
        %v2033 = vmax.f32 %v2017, 0.0
        %v2034 = vmax.f32 %v2018, 0.0
        %v2035 = vmax.f32 %v2019, 0.0
        %v2036 = vmax.f32 %v2020, 0.0
        %v2037 = vmax.f32 %v2021, 0.0
        %v2038 = vmax.f32 %v2022, 0.0
        %v2039 = vmax.f32 %v2023, 0.0
        %v2040 = vmax.f32 %v2024, 0.0
        %v2041 = vmax.f32 %v2025, 0.0
        %v2042 = vmax.f32 %v2026, 0.0
        %v2043 = vmax.f32 %v2027, 0.0
        %v2044 = vmax.f32 %v2028, 0.0
        %v2045 = vmax.f32 %v2029, 0.0
        %v2046 = vmax.f32 %v2030, 0.0
        %v2047 = vmax.f32 %v2031, 0.0
        %v2048 = vmax.f32 %v2032, 0.0
        %v2049 = vsel %vm994, %v2033, 0.0
        %v2050 = vsel %vm994, %v2034, 0.0
        %v2051 = vadd.f32 %v2049, %v2050
        %v2052 = vsel %vm994, %v2035, 0.0
        %v2053 = vadd.f32 %v2051, %v2052
        %v2054 = vsel %vm994, %v2036, 0.0
        %v2055 = vadd.f32 %v2053, %v2054
        %v2056 = vsel %vm994, %v2037, 0.0
        %v2057 = vadd.f32 %v2055, %v2056
        %v2058 = vsel %vm994, %v2038, 0.0
        %v2059 = vadd.f32 %v2057, %v2058
        %v2060 = vsel %vm994, %v2039, 0.0
        %v2061 = vadd.f32 %v2059, %v2060
        %v2062 = vsel %vm994, %v2040, 0.0
        %v2063 = vadd.f32 %v2061, %v2062
        %v2064 = vsel %vm994, %v2041, 0.0
        %v2065 = vadd.f32 %v2063, %v2064
        %v2066 = vsel %vm994, %v2042, 0.0
        %v2067 = vadd.f32 %v2065, %v2066
        %v2068 = vsel %vm994, %v2043, 0.0
        %v2069 = vadd.f32 %v2067, %v2068
        %v2070 = vsel %vm994, %v2044, 0.0
        %v2071 = vadd.f32 %v2069, %v2070
        %v2072 = vsel %vm994, %v2045, 0.0
        %v2073 = vadd.f32 %v2071, %v2072
        %v2074 = vsel %vm994, %v2046, 0.0
        %v2075 = vadd.f32 %v2073, %v2074
        %v2076 = vsel %vm994, %v2047, 0.0
        %v2077 = vadd.f32 %v2075, %v2076
        %v2078 = vsel %vm994, %v2048, 0.0
        %v2079 = vadd.f32 %v2077, %v2078
        %v2080 = vrot.slane %v2079, 4
        %v2081 = vadd.f32 %v2079, %v2080
        %v2082 = vrot.slane %v2081, 2
        %v2083 = vadd.f32 %v2081, %v2082
        %v2084 = vrot.slane %v2083, 1
        %v2085 = vadd.f32 %v2083, %v2084
        %v2086 = vmul.f32 %v2085, 0.015625
        %v2087 = vmul.f32 %v2033, %v2033
        %v2088 = vmul.f32 %v2034, %v2034
        %v2089 = vmul.f32 %v2035, %v2035
        %v2090 = vmul.f32 %v2036, %v2036
        %v2091 = vmul.f32 %v2037, %v2037
        %v2092 = vmul.f32 %v2038, %v2038
        %v2093 = vmul.f32 %v2039, %v2039
        %v2094 = vmul.f32 %v2040, %v2040
        %v2095 = vmul.f32 %v2041, %v2041
        %v2096 = vmul.f32 %v2042, %v2042
        %v2097 = vmul.f32 %v2043, %v2043
        %v2098 = vmul.f32 %v2044, %v2044
        %v2099 = vmul.f32 %v2045, %v2045
        %v2100 = vmul.f32 %v2046, %v2046
        %v2101 = vmul.f32 %v2047, %v2047
        %v2102 = vmul.f32 %v2048, %v2048
        %v2103 = vsel %vm994, %v2087, 0.0
        %v2104 = vsel %vm994, %v2088, 0.0
        %v2105 = vadd.f32 %v2103, %v2104
        %v2106 = vsel %vm994, %v2089, 0.0
        %v2107 = vadd.f32 %v2105, %v2106
        %v2108 = vsel %vm994, %v2090, 0.0
        %v2109 = vadd.f32 %v2107, %v2108
        %v2110 = vsel %vm994, %v2091, 0.0
        %v2111 = vadd.f32 %v2109, %v2110
        %v2112 = vsel %vm994, %v2092, 0.0
        %v2113 = vadd.f32 %v2111, %v2112
        %v2114 = vsel %vm994, %v2093, 0.0
        %v2115 = vadd.f32 %v2113, %v2114
        %v2116 = vsel %vm994, %v2094, 0.0
        %v2117 = vadd.f32 %v2115, %v2116
        %v2118 = vsel %vm994, %v2095, 0.0
        %v2119 = vadd.f32 %v2117, %v2118
        %v2120 = vsel %vm994, %v2096, 0.0
        %v2121 = vadd.f32 %v2119, %v2120
        %v2122 = vsel %vm994, %v2097, 0.0
        %v2123 = vadd.f32 %v2121, %v2122
        %v2124 = vsel %vm994, %v2098, 0.0
        %v2125 = vadd.f32 %v2123, %v2124
        %v2126 = vsel %vm994, %v2099, 0.0
        %v2127 = vadd.f32 %v2125, %v2126
        %v2128 = vsel %vm994, %v2100, 0.0
        %v2129 = vadd.f32 %v2127, %v2128
        %v2130 = vsel %vm994, %v2101, 0.0
        %v2131 = vadd.f32 %v2129, %v2130
        %v2132 = vsel %vm994, %v2102, 0.0
        %v2133 = vadd.f32 %v2131, %v2132
        %v2134 = vrot.slane %v2133, 4
        %v2135 = vadd.f32 %v2133, %v2134
        %v2136 = vrot.slane %v2135, 2
        %v2137 = vadd.f32 %v2135, %v2136
        %v2138 = vrot.slane %v2137, 1
        %v2139 = vadd.f32 %v2137, %v2138
        %v2140 = vmul.f32 %v2139, 0.015625
        %v2141 = vmul.f32 %v2086, %v2086
        %v2142 = vsub.f32 %v2140, %v2141
        %v2143 = vmax.f32 %v2142, 0.0
        %v2144 = vsub.f32 %v2033, %v2086
        %v2145 = vsub.f32 %v2034, %v2086
        %v2146 = vsub.f32 %v2035, %v2086
        %v2147 = vsub.f32 %v2036, %v2086
        %v2148 = vsub.f32 %v2037, %v2086
        %v2149 = vsub.f32 %v2038, %v2086
        %v2150 = vsub.f32 %v2039, %v2086
        %v2151 = vsub.f32 %v2040, %v2086
        %v2152 = vsub.f32 %v2041, %v2086
        %v2153 = vsub.f32 %v2042, %v2086
        %v2154 = vsub.f32 %v2043, %v2086
        %v2155 = vsub.f32 %v2044, %v2086
        %v2156 = vsub.f32 %v2045, %v2086
        %v2157 = vsub.f32 %v2046, %v2086
        %v2158 = vsub.f32 %v2047, %v2086
        %v2159 = vsub.f32 %v2048, %v2086
        %v2160 = vadd.f32 %v2143, 1e-12
        %v2161 = vrsqrt.pop %v2160
        %v2162 = vmul.f32 %v2144, %v2161
        %v2163 = vmul.f32 %v2145, %v2161
        %v2164 = vmul.f32 %v2146, %v2161
        %v2165 = vmul.f32 %v2147, %v2161
        %v2166 = vmul.f32 %v2148, %v2161
        %v2167 = vmul.f32 %v2149, %v2161
        %v2168 = vmul.f32 %v2150, %v2161
        %v2169 = vmul.f32 %v2151, %v2161
        %v2170 = vmul.f32 %v2152, %v2161
        %v2171 = vmul.f32 %v2153, %v2161
        %v2172 = vmul.f32 %v2154, %v2161
        %v2173 = vmul.f32 %v2155, %v2161
        %v2174 = vmul.f32 %v2156, %v2161
        %v2175 = vmul.f32 %v2157, %v2161
        %v2176 = vmul.f32 %v2158, %v2161
        %v2177 = vmul.f32 %v2159, %v2161
        %2178 = vset.pattern.permute.xlu0 4
        %2179 = vperm.xlu0 %2178, %v272
        %v2180 = vpop.permute.xlu0 %2179
        %2182 = vset.pattern.permute.xlu0 4
        %2183 = vperm.xlu0 %2182, %v273
        %v2184 = vpop.permute.xlu0 %2183
        %2186 = vset.pattern.permute.xlu0 4
        %2187 = vperm.xlu0 %2186, %v274
        %v2188 = vpop.permute.xlu0 %2187
        %2190 = vset.pattern.permute.xlu0 4
        %2191 = vperm.xlu0 %2190, %v275
        %v2192 = vpop.permute.xlu0 %2191
        %2194 = vset.pattern.permute.xlu0 4
        %2195 = vperm.xlu0 %2194, %v276
        %v2196 = vpop.permute.xlu0 %2195
        %2198 = vset.pattern.permute.xlu0 4
        %2199 = vperm.xlu0 %2198, %v277
        %v2200 = vpop.permute.xlu0 %2199
        %2202 = vset.pattern.permute.xlu0 4
        %2203 = vperm.xlu0 %2202, %v278
        %v2204 = vpop.permute.xlu0 %2203
        %2206 = vset.pattern.permute.xlu0 4
        %2207 = vperm.xlu0 %2206, %v279
        %v2208 = vpop.permute.xlu0 %2207
        %2210 = vset.pattern.permute.xlu0 4
        %2211 = vperm.xlu0 %2210, %v280
        %v2212 = vpop.permute.xlu0 %2211
        %2214 = vset.pattern.permute.xlu0 4
        %2215 = vperm.xlu0 %2214, %v281
        %v2216 = vpop.permute.xlu0 %2215
        %2218 = vset.pattern.permute.xlu0 4
        %2219 = vperm.xlu0 %2218, %v282
        %v2220 = vpop.permute.xlu0 %2219
        %2222 = vset.pattern.permute.xlu0 4
        %2223 = vperm.xlu0 %2222, %v283
        %v2224 = vpop.permute.xlu0 %2223
        %2226 = vset.pattern.permute.xlu0 4
        %2227 = vperm.xlu0 %2226, %v284
        %v2228 = vpop.permute.xlu0 %2227
        %2230 = vset.pattern.permute.xlu0 4
        %2231 = vperm.xlu0 %2230, %v285
        %v2232 = vpop.permute.xlu0 %2231
        %2234 = vset.pattern.permute.xlu0 4
        %2235 = vperm.xlu0 %2234, %v286
        %v2236 = vpop.permute.xlu0 %2235
        %2238 = vset.pattern.permute.xlu0 4
        %2239 = vperm.xlu0 %2238, %v287
        %v2240 = vpop.permute.xlu0 %2239
        %v2242 = vmul.f32 %v2162, %v2180
        %v2243 = vmul.f32 %v2163, %v2184
        %v2244 = vmul.f32 %v2164, %v2188
        %v2245 = vmul.f32 %v2165, %v2192
        %v2246 = vmul.f32 %v2166, %v2196
        %v2247 = vmul.f32 %v2167, %v2200
        %v2248 = vmul.f32 %v2168, %v2204
        %v2249 = vmul.f32 %v2169, %v2208
        %v2250 = vmul.f32 %v2170, %v2212
        %v2251 = vmul.f32 %v2171, %v2216
        %v2252 = vmul.f32 %v2172, %v2220
        %v2253 = vmul.f32 %v2173, %v2224
        %v2254 = vmul.f32 %v2174, %v2228
        %v2255 = vmul.f32 %v2175, %v2232
        %v2256 = vmul.f32 %v2176, %v2236
        %v2257 = vmul.f32 %v2177, %v2240
        %v2258 = vsel %vm994, %v2242, 0.0
        %v2259 = vsel %vm994, %v2243, 0.0
        %v2260 = vadd.f32 %v2258, %v2259
        %v2261 = vsel %vm994, %v2244, 0.0
        %v2262 = vadd.f32 %v2260, %v2261
        %v2263 = vsel %vm994, %v2245, 0.0
        %v2264 = vadd.f32 %v2262, %v2263
        %v2265 = vsel %vm994, %v2246, 0.0
        %v2266 = vadd.f32 %v2264, %v2265
        %v2267 = vsel %vm994, %v2247, 0.0
        %v2268 = vadd.f32 %v2266, %v2267
        %v2269 = vsel %vm994, %v2248, 0.0
        %v2270 = vadd.f32 %v2268, %v2269
        %v2271 = vsel %vm994, %v2249, 0.0
        %v2272 = vadd.f32 %v2270, %v2271
        %v2273 = vsel %vm994, %v2250, 0.0
        %v2274 = vadd.f32 %v2272, %v2273
        %v2275 = vsel %vm994, %v2251, 0.0
        %v2276 = vadd.f32 %v2274, %v2275
        %v2277 = vsel %vm994, %v2252, 0.0
        %v2278 = vadd.f32 %v2276, %v2277
        %v2279 = vsel %vm994, %v2253, 0.0
        %v2280 = vadd.f32 %v2278, %v2279
        %v2281 = vsel %vm994, %v2254, 0.0
        %v2282 = vadd.f32 %v2280, %v2281
        %v2283 = vsel %vm994, %v2255, 0.0
        %v2284 = vadd.f32 %v2282, %v2283
        %v2285 = vsel %vm994, %v2256, 0.0
        %v2286 = vadd.f32 %v2284, %v2285
        %v2287 = vsel %vm994, %v2257, 0.0
        %v2288 = vadd.f32 %v2286, %v2287
        %v2289 = vrot.slane %v2288, 4
        %v2290 = vadd.f32 %v2288, %v2289
        %v2291 = vrot.slane %v2290, 2
        %v2292 = vadd.f32 %v2290, %v2291
        %v2293 = vrot.slane %v2292, 1
        %v2294 = vadd.f32 %v2292, %v2293
        %s2295 = sld [smem:[#allocation2]]
        %v2296 = vstv %s2295
        %v2297 = vadd.f32 %v2294, %v2296
        %vm2298 = vcmask 122880
        %2299 = vst.msk [vmem:[%s261] sm:$0x1] %vm2298, %v2297
        %s2300 = sand.u32 %s140, 1
        %s2301 = scalar_lea.sflag [#allocation5], %s2300
        %s2302 = sand.u32 %s140, 1
        %s2303 = scalar_lea.vmem [#allocation9], %s2302
        // Predicated region
        $region53: #{_lambda_.1} parent=39 // pred_check
          %p2304 = pneg %p150
        $region54: #{_lambda_.1} parent=39 // pred_check_branch
          %2306 = sbr.rel (%p2304) target = $region56
        $region55: #{_lambda_.1} parent=39 // pred_region
          %s2308 = ssub.s32 16, 16
          %2309 = vsyncadd %s2301, %s2308
          %s2310 = smul.addr %s22, 16
          %s2311 = scalar_lea.hbm %s5, %s2310
          %s2313 = sshll.u32 %s2303, 4
          %s2314 = int_to_ptr.vmem [resolvable:$true] %s2313
          %2316 = dma.vmem_to_hbm [thread:$0]  %s2314, 16, %s2311, %s2301
        $region56: #{_lambda_.1} parent=39 // pred_fallthru
          _
      $region40: #{_lambda_.1} parent=5 // pred_fallthru
        _
      %p2317 = scmp.le.s32.totalorder 2, %s17
      // Predicated region
      $region57: #{_lambda_.1} parent=5 // pred_check
        %p2318 = pneg %p2317
      $region58: #{_lambda_.1} parent=5 // pred_check_branch
        %2320 = sbr.rel (%p2318) target = $region60
      $region59: #{_lambda_.1} parent=5 // pred_region
        %s2321 = ssub.s32 %s17, 2
        // Predicated region
        $region61: #{_lambda_.1} parent=59 // pred_check
          %p2322 = pneg %p156
        $region62: #{_lambda_.1} parent=59 // pred_check_branch
          %2324 = sbr.rel (%p2322) target = $region64
        $region63: #{_lambda_.1} parent=59 // pred_region
          %s2325 = sand.u32 %s141, 1
          %s2326 = scalar_lea.sflag [#allocation5], %s2325
          %s2327 = sand.u32 %s141, 1
          %s2328 = scalar_lea.vmem [#allocation9], %s2327
          %2329 = dma.done %s2326, 16
        $region64: #{_lambda_.1} parent=59 // pred_fallthru
          _
      $region60: #{_lambda_.1} parent=5 // pred_fallthru
        _
    $region6: #{_lambda_.1} parent=1 // loop_footer
      %s21 = sadd.s32 1, %s17
    $region7: #{_lambda_.1} parent=1 // loop_footer_branch
      %16 = sbr.rel target = $region3
    $region8: #{_lambda_.1} parent=1 // loop_exit
      _
    %2330 = vsyncpa [#allocation4], 1
    %s2331 = scalar_lea.sflag [#allocation4], 1
    %2332 = vsyncpa %s2331, 1
    %2333 = vsyncpa [#allocation7], 1
    %2334 = vsyncpa [#allocation5], 1
    %s2335 = scalar_lea.sflag [#allocation5], 1
    %2336 = vsyncpa %s2335, 1

</llo_original>
